<compile_context>
chip_gen: v6e
topology: v6e:2x2x1
jax: 0.10.0
libtpu: 0.0.40
codegen_flags: <defaults>
</compile_context>

<pallas_src>
import functools

import jax
import jax.numpy as jnp
from jax.experimental import pallas as pl
from jax.experimental.pallas import tpu as pltpu


# ----------------------------------------------------------------------------
# Helpers
# ----------------------------------------------------------------------------

def _tpu_vmem_and_cores():
    """Best-effort query of per-core VMEM capacity and TensorCore count."""
    vmem_cap = 128 << 20
    num_tc = 1
    try:
        info = pltpu.get_tpu_info()
        cap = getattr(info, "vmem_capacity_bytes", None)
        if cap:
            vmem_cap = int(cap)
        for attr in ("num_cores", "num_tensorcores", "tensorcore_count",
                     "core_count"):
            v = getattr(info, attr, None)
            if isinstance(v, int) and v > 0:
                num_tc = v
                break
    except Exception:
        pass  # interpret mode / older runtimes: conservative defaults above
    return vmem_cap, num_tc


def _group_matrices(num_channels, cg):
    """0/1 collapse (G, C) and expand (C, G) matrices for contiguous groups.

    Built with iota + compare only (no integer division) so lowering is safe.
    """
    g = num_channels // cg
    ci = jax.lax.broadcasted_iota(jnp.int32, (g, num_channels), 1)   # channel
    gi = jax.lax.broadcasted_iota(jnp.int32, (g, num_channels), 0)   # group
    mc = ((ci >= gi * cg) & (ci < gi * cg + cg)).astype(jnp.float32)  # (G, C)
    cj = jax.lax.broadcasted_iota(jnp.int32, (num_channels, g), 0)
    gj = jax.lax.broadcasted_iota(jnp.int32, (num_channels, g), 1)
    me = ((cj >= gj * cg) & (cj < gj * cg + cg)).astype(jnp.float32)  # (C, G)
    return mc, me


# ----------------------------------------------------------------------------
# Main path: one (batch, channel-block) slab resident in VMEM per grid step.
# ----------------------------------------------------------------------------

def _gbn_kernel(x_ref, w_ref, b_ref, o_ref, *, cg, channels_per_block,
                num_channel_blocks, hw_valid, eps):
    cb = channels_per_block
    x = x_ref[...].astype(jnp.float32)                      # (cb, hw_pad)
    hw_pad = x.shape[-1]
    n = cg * hw_valid                                       # true elems / group
    hi = jax.lax.Precision.HIGHEST

    mc, me = _group_matrices(cb, cg)                        # tiny (gb,cb)/(cb,gb)

    # Pass 1: per-group mean.  Lane-reduce the big array to a (cb,1) column,
    # then collapse/expand with tiny matmuls — the big array keeps its layout.
    # Zero-padded lanes contribute exactly 0 to the sum.
    s_c = jnp.sum(x, axis=-1, keepdims=True)                            # (cb,1)
    mean_g = jnp.dot(mc, s_c, preferred_element_type=jnp.float32,
                     precision=hi) * (1.0 / n)                          # (gb,1)
    mean_c = jnp.dot(me, mean_g, preferred_element_type=jnp.float32,
                     precision=hi)                                      # (cb,1)

    # Pass 2: unbiased variance around the true mean (extra VMEM reads / VALU
    # are hidden under the HBM DMA).  Mask padded lanes out of the centered
    # values (only in the ragged-HW case; trace-time branch).
    xc = x - mean_c
    if hw_pad != hw_valid:
        lane = jax.lax.broadcasted_iota(jnp.int32, (1, hw_pad), 1)
        xc = jnp.where(lane < hw_valid, xc, 0.0)
    ss_c = jnp.sum(xc * xc, axis=-1, keepdims=True)                     # (cb,1)
    ss_g = jnp.dot(mc, ss_c, preferred_element_type=jnp.float32,
                   precision=hi)                                        # (gb,1)
    std_g = jnp.sqrt(ss_g * (1.0 / (n - 1)))
    inv_c = jnp.dot(me, 1.0 / (std_g + eps),
                    preferred_element_type=jnp.float32, precision=hi)   # (cb,1)

    # This step's slice of the resident per-channel affine parameters.
    if num_channel_blocks == 1:
        w = w_ref[...].astype(jnp.float32)                              # (cb,1)
        b = b_ref[...].astype(jnp.float32)
    else:
        c0 = pl.multiple_of(pl.program_id(1) * cb, cb)   # cb is 8-aligned here
        w = w_ref[pl.ds(c0, cb), :].astype(jnp.float32)
        b = b_ref[pl.ds(c0, cb), :].astype(jnp.float32)

    # Fused normalize + affine: out = (x - mean) * (w / (std + eps)) + b.
    scale = w * inv_c                                                   # (cb,1)
    o_ref[...] = (xc * scale + b).astype(o_ref.dtype)


# ----------------------------------------------------------------------------
# Fallback path: a single group does not fit VMEM -> chunk over H*W.
#   Kernel A accumulates per-channel sum / sum-of-squares over HW chunks and
#   finalizes per-channel scale/shift; kernel B applies them elementwise.
# ----------------------------------------------------------------------------

def _gbn_stats_kernel(x_ref, w_ref, b_ref, scale_ref, shift_ref, s_acc, ss_acc,
                      *, cg, n_valid, eps):
    h = pl.program_id(1)

    @pl.when(h == 0)
    def _():
        s_acc[...] = jnp.zeros_like(s_acc)
        ss_acc[...] = jnp.zeros_like(ss_acc)

    x = x_ref[...].astype(jnp.float32)                      # (C, hw_chunk)
    s_acc[...] += jnp.sum(x, axis=-1, keepdims=True)        # pad zeros are exact
    ss_acc[...] += jnp.sum(x * x, axis=-1, keepdims=True)

    @pl.when(h == pl.num_programs(1) - 1)
    def _():
        c = s_acc.shape[0]
        mc, me = _group_matrices(c, cg)
        hi = jax.lax.Precision.HIGHEST
        s_g = jnp.dot(mc, s_acc[...], preferred_element_type=jnp.float32,
                      precision=hi)
        ss_g = jnp.dot(mc, ss_acc[...], preferred_element_type=jnp.float32,
                       precision=hi)
        mean_g = s_g * (1.0 / n_valid)
        # TODO(synk): single-pass E[x^2]-E[x]^2 can cancel when |mean| >> std;
        # the resident-block main path uses a true two-pass form instead.
        var_g = (ss_g - s_g * mean_g) * (1.0 / (n_valid - 1))
        inv_g = 1.0 / (jnp.sqrt(jnp.maximum(var_g, 0.0)) + eps)
        mean_c = jnp.dot(me, mean_g, preferred_element_type=jnp.float32,
                         precision=hi)
        inv_c = jnp.dot(me, inv_g, preferred_element_type=jnp.float32,
                        precision=hi)
        w = w_ref[...].astype(jnp.float32)
        b = b_ref[...].astype(jnp.float32)
        scale_ref[...] = w * inv_c
        shift_ref[...] = b - mean_c * (w * inv_c)


def _gbn_apply_kernel(x_ref, scale_ref, shift_ref, o_ref):
    o_ref[...] = (x_ref[...].astype(jnp.float32) * scale_ref[...]
                  + shift_ref[...]).astype(o_ref.dtype)


def _group_batchnorm2d_chunked(xg, w2, b2, *, cg, hw_valid, eps, budget_bytes,
                               vmem_ceiling_bytes, out_dtype):
    N, C, hw_pad = xg.shape
    ex = xg.dtype.itemsize

    # HW chunk: a 128-multiple dividing hw_pad such that double-buffered in/out
    # (native dtype) plus ~3 block-sized f32 temporaries fit the budget.
    bytes_per_col = C * (2 * ex + 2 * ex + 3 * 4)
    cols_budget = max(1, int(budget_bytes // (128 * bytes_per_col)))
    n_cols = hw_pad // 128
    div = 1
    for d in range(1, n_cols + 1):
        if n_cols % d == 0 and d <= cols_budget:
            div = d
    hw_chunk = 128 * div
    n_hw = hw_pad // hw_chunk
    n_valid = cg * hw_valid

    need = hw_chunk * bytes_per_col
    vmem_limit = int(min(vmem_ceiling_bytes, max(32 << 20, need + (4 << 20))))

    stats_kernel = functools.partial(_gbn_stats_kernel, cg=cg, n_valid=n_valid,
                                     eps=eps)
    scale, shift = pl.pallas_call(
        stats_kernel,
        out_shape=(jax.ShapeDtypeStruct((N, C, 1), jnp.float32),
                   jax.ShapeDtypeStruct((N, C, 1), jnp.float32)),
        grid_spec=pltpu.PrefetchScalarGridSpec(
            num_scalar_prefetch=0,
            grid=(N, n_hw),
            in_specs=[
                pl.BlockSpec((None, C, hw_chunk), lambda n, h: (n, 0, h)),
                pl.BlockSpec((C, 1), lambda n, h: (0, 0)),
                pl.BlockSpec((C, 1), lambda n, h: (0, 0)),
            ],
            out_specs=(
                pl.BlockSpec((None, C, 1), lambda n, h: (n, 0, 0)),
                pl.BlockSpec((None, C, 1), lambda n, h: (n, 0, 0)),
            ),
            scratch_shapes=[pltpu.VMEM((C, 1), jnp.float32),
                            pltpu.VMEM((C, 1), jnp.float32)],
        ),
        compiler_params=pltpu.CompilerParams(
            dimension_semantics=("parallel", "arbitrary"),
            vmem_limit_bytes=vmem_limit,
        ),
    )(xg, w2, b2)

    out = pl.pallas_call(
        _gbn_apply_kernel,
        out_shape=jax.ShapeDtypeStruct((N, C, hw_pad), out_dtype),
        grid_spec=pltpu.PrefetchScalarGridSpec(
            num_scalar_prefetch=0,
            grid=(N, n_hw),
            in_specs=[
                pl.BlockSpec((None, C, hw_chunk), lambda n, h: (n, 0, h)),
                pl.BlockSpec((None, C, 1), lambda n, h: (n, 0, 0)),
                pl.BlockSpec((None, C, 1), lambda n, h: (n, 0, 0)),
            ],
            out_specs=pl.BlockSpec((None, C, hw_chunk), lambda n, h: (n, 0, h)),
        ),
        compiler_params=pltpu.CompilerParams(
            dimension_semantics=("parallel", "parallel"),
            vmem_limit_bytes=vmem_limit,
        ),
    )(xg, scale, shift)
    return out


# ----------------------------------------------------------------------------
# Public wrapper
# ----------------------------------------------------------------------------

def group_batchnorm2d(x, weight, bias, *, group_num=16, eps=1e-10,
                      block_budget_bytes=None):
    """x: (N, C, H, W); weight/bias: (C, 1, 1) — same semantics as the module."""
    N, C, H, W = x.shape
    assert C >= group_num and C % group_num == 0
    cg = C // group_num
    hw = H * W
    assert cg * hw > 1, "unbiased std needs more than one element per group"

    # Lane-dense layout: channels on the sublane axis, H*W on the lane axis,
    # padded to a multiple of 128 so all stores are full-width (never vst.msk).
    hw_pad = ((hw + 127) // 128) * 128
    xg = x.reshape(N, C, hw)
    if hw_pad != hw:
        xg = jnp.pad(xg, ((0, 0), (0, 0), (0, hw_pad - hw)))
    w2 = weight.reshape(C, 1)
    b2 = bias.reshape(C, 1)

    # Generation-aware VMEM budget: ~48 MiB on 64-MiB parts (v7x, leaves
    # headroom for compiler scratch), ~96 MiB on 128-MiB parts (v5e/v6e).
    vmem_cap, num_tc = _tpu_vmem_and_cores()
    vmem_ceiling = (48 << 20) if vmem_cap <= (64 << 20) else (96 << 20)
    budget = vmem_ceiling if block_budget_bytes is None else int(block_budget_bytes)

    # Per-group VMEM: double-buffered input + output at their native element
    # sizes (bf16 I/O stays bf16 in HBM) plus ~4 block-sized f32 temporaries.
    ex = x.dtype.itemsize
    per_group = cg * hw_pad * (2 * ex + 2 * ex + 4 * 4)

    # Candidate group-block sizes: divisors of group_num whose channel count is
    # sublane-aligned (or spans all channels) and whose footprint fits.
    divisors = [d for d in range(1, group_num + 1) if group_num % d == 0]
    cand = [d for d in divisors if (d * cg) % 8 == 0 or d == group_num]
    fitting = [d for d in cand if d * per_group <= budget]

    if not fitting:
        # Even one group is too big for the budget: chunk over H*W with a
        # two-pass (stats accumulation, then normalize) pipeline.
        out = _group_batchnorm2d_chunked(
            xg, w2, b2, cg=cg, hw_valid=hw, eps=eps, budget_bytes=budget,
            vmem_ceiling_bytes=vmem_ceiling, out_dtype=x.dtype)
    else:
        gb = max(fitting)
        # Split into >=2 group blocks only when that feeds a second TensorCore
        # (N == 1 on a multi-TC part); otherwise bigger blocks win (fewer grid
        # steps, larger contiguous DMAs).
        if N == 1 and num_tc >= 2:
            split2 = [d for d in fitting if group_num // d >= 2]
            if split2:
                gb = max(split2)
        n_gblk = group_num // gb
        cb = gb * cg

        vmem_limit = int(min(vmem_ceiling,
                             max(32 << 20, gb * per_group + (4 << 20))))
        kernel = functools.partial(
            _gbn_kernel, cg=cg, channels_per_block=cb,
            num_channel_blocks=n_gblk, hw_valid=hw, eps=eps)

        out = pl.pallas_call(
            kernel,
            out_shape=jax.ShapeDtypeStruct((N, C, hw_pad), x.dtype),
            grid_spec=pltpu.PrefetchScalarGridSpec(
                num_scalar_prefetch=0,
                grid=(N, n_gblk),
                in_specs=[
                    pl.BlockSpec((None, cb, hw_pad), lambda n, g: (n, g, 0)),
                    # Full affine params, constant block index -> fetched once,
                    # VMEM-resident across the whole grid (no per-step micro-DMAs).
                    pl.BlockSpec((C, 1), lambda n, g: (0, 0)),
                    pl.BlockSpec((C, 1), lambda n, g: (0, 0)),
                ],
                out_specs=pl.BlockSpec((None, cb, hw_pad),
                                       lambda n, g: (n, g, 0)),
            ),
            compiler_params=pltpu.CompilerParams(
                dimension_semantics=("parallel", "parallel"),
                vmem_limit_bytes=vmem_limit,
            ),
        )(xg, w2, b2)

    if hw_pad != hw:
        out = out[..., :hw]
    return out.reshape(N, C, H, W)


# ----------------------------------------------------------------------------
# Reference + smoke test
# ----------------------------------------------------------------------------

def _reference(x, weight, bias, group_num, eps):
    N, C, H, W = x.shape
    xf = x.astype(jnp.float32).reshape(N, group_num, -1)
    mean = jnp.mean(xf, axis=2, keepdims=True)
    var = jnp.sum((xf - mean) ** 2, axis=2, keepdims=True) / (xf.shape[2] - 1)
    std = jnp.sqrt(var)
    xn = ((xf - mean) / (std + eps)).reshape(N, C, H, W)
    return xn * weight.reshape(1, C, 1, 1) + bias.reshape(1, C, 1, 1)


if __name__ == "__main__":
    key = jax.random.PRNGKey(0)
    kx, kw = jax.random.split(key)

    N, C, H, W = 2, 32, 16, 16
    group_num = 16
    eps = 1e-10

    x = jax.random.normal(kx, (N, C, H, W), dtype=jnp.float32)
    # nn.Parameter(torch.randn(c_num, 1, 1)) -> deterministic random init here.
    weight = jax.random.normal(kw, (C, 1, 1), dtype=jnp.float32)
    bias = jnp.zeros((C, 1, 1), dtype=jnp.float32)

    ref = _reference(x, weight, bias, group_num, eps)

    # Main path: whole (batch, channel-block) slab resident in VMEM.
    out = jax.block_until_ready(
        group_batchnorm2d(x, weight, bias, group_num=group_num, eps=eps))
    assert out.shape == (N, C, H, W)
    assert jnp.allclose(out, ref, atol=1e-4, rtol=1e-4), "main path mismatch"

    # Also exercise the chunked two-pass fallback (large-feature-map path) by
    # forcing a tiny block budget, and check it against the same reference.
    out_fb = jax.block_until_ready(
        group_batchnorm2d(x, weight, bias, group_num=group_num, eps=eps,
                          block_budget_bytes=8 * 1024))
    assert jnp.allclose(out_fb, ref, atol=1e-4, rtol=1e-4), "fallback mismatch"

    print("KERNEL_OK")
</pallas_src>

<mosaic_0001>
module attributes {stable_mosaic.version = 11 : i64} {
  func.func @_gbn_kernel(%arg0: i32, %arg1: i32, %arg2: memref<1x32x256xf32, #tpu.memory_space<vmem>>, %arg3: memref<32x1xf32, #tpu.memory_space<vmem>>, %arg4: memref<32x1xf32, #tpu.memory_space<vmem>>, %arg5: memref<1x32x256xf32, #tpu.memory_space<vmem>>) attributes {dimension_semantics = [#tpu.dimension_semantics<parallel>, #tpu.dimension_semantics<parallel>], iteration_bounds = array<i64: 2, 1>, scalar_prefetch = 0 : i64, scratch_operands = 0 : i64, tpu.core_type = #tpu.core_type<tc>, window_params = [{transform_indices = @transform_0, window_bounds = array<i64: 1, 32, 256>}, {pipeline_mode = #tpu.pipeline_mode<synchronous>, transform_indices = @transform_1, window_bounds = array<i64: 32, 1>}, {pipeline_mode = #tpu.pipeline_mode<synchronous>, transform_indices = @transform_2, window_bounds = array<i64: 32, 1>}, {transform_indices = @transform_3, window_bounds = array<i64: 1, 32, 256>}]} {
    %c0 = arith.constant 0 : index
    %c0_0 = arith.constant 0 : index
    %c0_1 = arith.constant 0 : index
    %0 = vector.load %arg2[%c0, %c0_0, %c0_1] : memref<1x32x256xf32, #tpu.memory_space<vmem>>, vector<1x32x256xf32>
    %1 = vector.shape_cast %0 : vector<1x32x256xf32> to vector<32x256xf32>
    %2 = tpu.iota {dimensions = array<i32: 1>} : vector<16x32xi32>
    %3 = tpu.iota {dimensions = array<i32: 0>} : vector<16x32xi32>
    %c2_i32 = arith.constant 2 : i32
    %4 = vector.broadcast %c2_i32 : i32 to vector<16x32xi32>
    %5 = arith.muli %3, %4 : vector<16x32xi32>
    %6 = arith.cmpi sge, %2, %5 : vector<16x32xi32>
    %c2_i32_2 = arith.constant 2 : i32
    %7 = vector.broadcast %c2_i32_2 : i32 to vector<16x32xi32>
    %8 = arith.muli %3, %7 : vector<16x32xi32>
    %c2_i32_3 = arith.constant 2 : i32
    %9 = vector.broadcast %c2_i32_3 : i32 to vector<16x32xi32>
    %10 = arith.addi %8, %9 : vector<16x32xi32>
    %11 = arith.cmpi slt, %2, %10 : vector<16x32xi32>
    %12 = arith.andi %6, %11 : vector<16x32xi1>
    %13 = arith.extui %12 : vector<16x32xi1> to vector<16x32xi32>
    %14 = arith.sitofp %13 : vector<16x32xi32> to vector<16x32xf32>
    %15 = tpu.iota {dimensions = array<i32: 0>} : vector<32x16xi32>
    %16 = tpu.iota {dimensions = array<i32: 1>} : vector<32x16xi32>
    %c2_i32_4 = arith.constant 2 : i32
    %17 = vector.broadcast %c2_i32_4 : i32 to vector<32x16xi32>
    %18 = arith.muli %16, %17 : vector<32x16xi32>
    %19 = arith.cmpi sge, %15, %18 : vector<32x16xi32>
    %c2_i32_5 = arith.constant 2 : i32
    %20 = vector.broadcast %c2_i32_5 : i32 to vector<32x16xi32>
    %21 = arith.muli %16, %20 : vector<32x16xi32>
    %c2_i32_6 = arith.constant 2 : i32
    %22 = vector.broadcast %c2_i32_6 : i32 to vector<32x16xi32>
    %23 = arith.addi %21, %22 : vector<32x16xi32>
    %24 = arith.cmpi slt, %15, %23 : vector<32x16xi32>
    %25 = arith.andi %19, %24 : vector<32x16xi1>
    %26 = arith.extui %25 : vector<32x16xi1> to vector<32x16xi32>
    %27 = arith.sitofp %26 : vector<32x16xi32> to vector<32x16xf32>
    %cst = arith.constant dense<0.000000e+00> : vector<32xf32>
    %28 = vector.multi_reduction <add>, %1, %cst [1] : vector<32x256xf32> to vector<32xf32>
    %29 = vector.shape_cast %28 : vector<32xf32> to vector<32x1xf32>
    %cst_7 = arith.constant dense<0.000000e+00> : vector<16x1xf32>
    %30 = tpu.matmul %14, %29, %cst_7 {dimension_numbers = #tpu.dot_dimension_numbers<[1], [0], [0], [1], [0, 0, 1, 1], [], []>, precision = #tpu.contract_precision<fp32>} : vector<16x32xf32>, vector<32x1xf32>, vector<16x1xf32> -> vector<16x1xf32>
    %cst_8 = arith.constant 0.001953125 : f32
    %31 = vector.broadcast %cst_8 : f32 to vector<16x1xf32>
    %32 = arith.mulf %30, %31 : vector<16x1xf32>
    %cst_9 = arith.constant dense<0.000000e+00> : vector<32x1xf32>
    %33 = tpu.matmul %27, %32, %cst_9 {dimension_numbers = #tpu.dot_dimension_numbers<[1], [0], [0], [1], [0, 0, 1, 1], [], []>, precision = #tpu.contract_precision<fp32>} : vector<32x16xf32>, vector<16x1xf32>, vector<32x1xf32> -> vector<32x1xf32>
    %34 = vector.broadcast %33 : vector<32x1xf32> to vector<32x256xf32>
    %35 = arith.subf %1, %34 : vector<32x256xf32>
    %36 = arith.mulf %35, %35 : vector<32x256xf32>
    %cst_10 = arith.constant dense<0.000000e+00> : vector<32xf32>
    %37 = vector.multi_reduction <add>, %36, %cst_10 [1] : vector<32x256xf32> to vector<32xf32>
    %38 = vector.shape_cast %37 : vector<32xf32> to vector<32x1xf32>
    %cst_11 = arith.constant dense<0.000000e+00> : vector<16x1xf32>
    %39 = tpu.matmul %14, %38, %cst_11 {dimension_numbers = #tpu.dot_dimension_numbers<[1], [0], [0], [1], [0, 0, 1, 1], [], []>, precision = #tpu.contract_precision<fp32>} : vector<16x32xf32>, vector<32x1xf32>, vector<16x1xf32> -> vector<16x1xf32>
    %cst_12 = arith.constant 0.00195694715 : f32
    %40 = vector.broadcast %cst_12 : f32 to vector<16x1xf32>
    %41 = arith.mulf %39, %40 : vector<16x1xf32>
    %42 = math.sqrt %41 : vector<16x1xf32>
    %cst_13 = arith.constant 1.000000e-10 : f32
    %43 = vector.broadcast %cst_13 : f32 to vector<16x1xf32>
    %44 = arith.addf %42, %43 : vector<16x1xf32>
    %cst_14 = arith.constant 1.000000e+00 : f32
    %45 = vector.broadcast %cst_14 : f32 to vector<16x1xf32>
    %46 = arith.divf %45, %44 : vector<16x1xf32>
    %cst_15 = arith.constant dense<0.000000e+00> : vector<32x1xf32>
    %47 = tpu.matmul %27, %46, %cst_15 {dimension_numbers = #tpu.dot_dimension_numbers<[1], [0], [0], [1], [0, 0, 1, 1], [], []>, precision = #tpu.contract_precision<fp32>} : vector<32x16xf32>, vector<16x1xf32>, vector<32x1xf32> -> vector<32x1xf32>
    %c0_16 = arith.constant 0 : index
    %c0_17 = arith.constant 0 : index
    %48 = vector.load %arg3[%c0_16, %c0_17] : memref<32x1xf32, #tpu.memory_space<vmem>>, vector<32x1xf32>
    %c0_18 = arith.constant 0 : index
    %c0_19 = arith.constant 0 : index
    %49 = vector.load %arg4[%c0_18, %c0_19] : memref<32x1xf32, #tpu.memory_space<vmem>>, vector<32x1xf32>
    %50 = arith.mulf %48, %47 : vector<32x1xf32>
    %51 = vector.broadcast %50 : vector<32x1xf32> to vector<32x256xf32>
    %52 = arith.mulf %35, %51 : vector<32x256xf32>
    %53 = vector.broadcast %49 : vector<32x1xf32> to vector<32x256xf32>
    %54 = arith.addf %52, %53 : vector<32x256xf32>
    %c0_20 = arith.constant 0 : index
    %c0_21 = arith.constant 0 : index
    %c0_22 = arith.constant 0 : index
    %55 = vector.load %arg5[%c0_20, %c0_21, %c0_22] : memref<1x32x256xf32, #tpu.memory_space<vmem>>, vector<1x32x256xf32>
    %56 = vector.shape_cast %55 : vector<1x32x256xf32> to vector<32x256xf32>
    %57 = vector.shape_cast %54 : vector<32x256xf32> to vector<1x32x256xf32>
    tpu.vector_store %arg5[%c0_20, %c0_21, %c0_22], %57 {strides = array<i32>} : memref<1x32x256xf32, #tpu.memory_space<vmem>>, vector<1x32x256xf32>,
    return
  }
  func.func @transform_0(%arg0: i32, %arg1: i32) -> (i32, i32, i32) {
    %c0_i32 = arith.constant 0 : i32
    %c0_i32_0 = arith.constant 0 : i32
    return %arg0, %arg1, %c0_i32 : i32, i32, i32
  }
  func.func @transform_1(%arg0: i32, %arg1: i32) -> (i32, i32) {
    %c0_i32 = arith.constant 0 : i32
    %c0_i32_0 = arith.constant 0 : i32
    %c0_i32_1 = arith.constant 0 : i32
    return %c0_i32, %c0_i32_0 : i32, i32
  }
  func.func @transform_2(%arg0: i32, %arg1: i32) -> (i32, i32) {
    %c0_i32 = arith.constant 0 : i32
    %c0_i32_0 = arith.constant 0 : i32
    %c0_i32_1 = arith.constant 0 : i32
    return %c0_i32, %c0_i32_0 : i32, i32
  }
  func.func @transform_3(%arg0: i32, %arg1: i32) -> (i32, i32, i32) {
    %c0_i32 = arith.constant 0 : i32
    %c0_i32_0 = arith.constant 0 : i32
    return %arg0, %arg1, %c0_i32 : i32, i32, i32
  }
}

</mosaic_0001>

<llo_original>
// kernel: tpu_custom_call.1
$region0: #{tpu_custom_call.1}
  #allocation0 [shape = 'u32[]', space=smem, size = 0x4, offset = 0x4, fixed_abs, tag = 'smem constant byte address 0x4 - core index']
  #allocation1 [shape = 'u32[144,128]{1,0:T(1,128)}', space=vmem, size = 0x12000, scoped, tag = 'internal scratch']
  %s0 = inlined_call_operand.hbm [shape: f32[2,32,256], index: 0, kind: input, shape index: {}]
  %s1 = inlined_call_operand.vmem [shape: f32[32,1], index: 1, kind: input, shape index: {}]
  %s2 = inlined_call_operand.vmem [shape: f32[32,1], index: 2, kind: input, shape index: {}]
  %s3 = inlined_call_operand.hbm [shape: f32[2,32,256], index: 3, kind: output, shape index: {}]
  %s4 = sld [smem:[#allocation0]]
  $region49: #{tpu_custom_call.1} parent=0
    _
  %s6 = ssub.s32 1, %s4
  %s7 = scalar_select 0, %s6, %s4
  $region1: #{tpu_custom_call.1} parent=0
    #allocation2 [shape = 'u8[65536]{0}', space=vmem, size = 0x10000, scoped, tag = 'input window, operand 0']
    #allocation3 [shape = 's32[2]{0}', space=sflag, size = 0x8, scoped, tag = 'scoped memory for tpu_custom_call.1']
    #allocation4 [shape = 's32[2]{0}', space=sflag, size = 0x8, scoped, tag = 'scoped memory for tpu_custom_call.1']
    #allocation5 [shape = 'u8[65536]{0}', space=vmem, size = 0x10000, scoped, tag = 'output window, operand 0']
    %8 = vsyncpa [#allocation3], 0
    %s9 = scalar_lea.sflag [#allocation3], 1
    %10 = vsyncpa %s9, 0
    %11 = vsyncpa [#allocation4], 0
    %s12 = scalar_lea.sflag [#allocation4], 1
    %13 = vsyncpa %s12, 0
    loop: start=0, step=1, limit=4
    $region2: #{tpu_custom_call.1} parent=1 // loop_pre_header
      _
    $region3: #{tpu_custom_call.1} parent=1 // loop_header
      %s15 = sphi 0, %s19
      %p16 = scmp.ge.s32.totalorder %s15, 4
      %s22 = sphi 0, %s34
      %s23 = sphi 0, %s30
      %s24 = sphi 0, %s22
      %s25 = sphi 0, %s23
      %s26 = sphi 0, %s24
      %s27 = sphi 0, %s25
      %s39 = sphi 0, %s41
      %s42 = sphi 0, %s39
      %s43 = sphi 0, %s42
      %s59 = sphi 0, %s43
      %s63 = sphi 0, %s63
      %s65 = sphi 0, %s63
      %s66 = sphi 0, %s65
      %s80 = sphi 0, %s66
      %s84 = sphi 0, %s84
      %s86 = sphi 0, %s84
      %s87 = sphi 0, %s86
      %s101 = sphi 0, %s87
      %s109 = sphi 0, %s111
      %s112 = sphi 0, %s109
      %s113 = sphi 0, %s112
      %s129 = sphi 0, %s113
    $region4: #{tpu_custom_call.1} parent=1 // loop_header_branch
      %18 = sbr.rel (%p16) target = $region8
    $region5: #{tpu_custom_call.1} parent=1 // loop_body
      %s20 = ssub.s32 %s15, 1
      %s21 = ssub.s32 %s15, 2
      %s28 = sadd.s32 1, %s23
      %p29 = scmp.ge.s32.totalorder %s28, 1
      %s30 = scalar_select %p29, 0, %s28
      %s31 = sadd.s32 1, %s22
      %s32 = scalar_select %p29, %s31, %s22
      %p33 = scmp.ge.s32.totalorder %s32, 2
      %s34 = scalar_select %p33, 0, %s32
      %s35 = ssub.s32 %s22, %s34
      %s36 = ssub.s32 %s23, %s30
      %s37 = sor.u32 %s35, %s36
      %p38 = scmp.eq.s32.totalorder %s37, 0
      %s40 = sadd.s32 %s39, 1
      %s41 = scalar_select %p38, %s39, %s40
      %p44 = pneg %p38
      %p45 = scmp.eq.s32.totalorder %s15, 1
      %p46 = por %p44, %p45
      %p47 = scmp.ne.s32.totalorder %s39, %s42
      %p48 = scmp.eq.s32.totalorder %s15, 0
      %p49 = por %p47, %p48
      %p50 = scmp.ne.s32.totalorder %s39, %s42
      %p51 = scmp.eq.s32.totalorder %s20, 1
      %p52 = por %p50, %p51
      %p53 = scmp.ne.s32.totalorder %s42, %s43
      %p54 = scmp.eq.s32.totalorder %s20, 0
      %p55 = por %p53, %p54
      %p56 = scmp.ne.s32.totalorder %s42, %s43
      %p57 = scmp.eq.s32.totalorder %s21, 1
      %p58 = por %p56, %p57
      %p60 = scmp.ne.s32.totalorder %s43, %s59
      %p61 = scmp.eq.s32.totalorder %s21, 0
      %p62 = por %p60, %p61
      %s64 = sadd.s32 %s63, 1
      %p67 = scmp.eq.s32.totalorder %s15, 1
      %p68 = scmp.ne.s32.totalorder %s63, %s65
      %p69 = scmp.eq.s32.totalorder %s15, 0
      %p70 = por %p68, %p69
      %p71 = scmp.ne.s32.totalorder %s63, %s65
      %p72 = scmp.eq.s32.totalorder %s20, 1
      %p73 = por %p71, %p72
      %p74 = scmp.ne.s32.totalorder %s65, %s66
      %p75 = scmp.eq.s32.totalorder %s20, 0
      %p76 = por %p74, %p75
      %p77 = scmp.ne.s32.totalorder %s65, %s66
      %p78 = scmp.eq.s32.totalorder %s21, 1
      %p79 = por %p77, %p78
      %p81 = scmp.ne.s32.totalorder %s66, %s80
      %p82 = scmp.eq.s32.totalorder %s21, 0
      %p83 = por %p81, %p82
      %s85 = sadd.s32 %s84, 1
      %p88 = scmp.eq.s32.totalorder %s15, 1
      %p89 = scmp.ne.s32.totalorder %s84, %s86
      %p90 = scmp.eq.s32.totalorder %s15, 0
      %p91 = por %p89, %p90
      %p92 = scmp.ne.s32.totalorder %s84, %s86
      %p93 = scmp.eq.s32.totalorder %s20, 1
      %p94 = por %p92, %p93
      %p95 = scmp.ne.s32.totalorder %s86, %s87
      %p96 = scmp.eq.s32.totalorder %s20, 0
      %p97 = por %p95, %p96
      %p98 = scmp.ne.s32.totalorder %s86, %s87
      %p99 = scmp.eq.s32.totalorder %s21, 1
      %p100 = por %p98, %p99
      %p102 = scmp.ne.s32.totalorder %s87, %s101
      %p103 = scmp.eq.s32.totalorder %s21, 0
      %p104 = por %p102, %p103
      %s105 = ssub.s32 %s22, %s34
      %s106 = ssub.s32 %s23, %s30
      %s107 = sor.u32 %s105, %s106
      %p108 = scmp.eq.s32.totalorder %s107, 0
      %s110 = sadd.s32 %s109, 1
      %s111 = scalar_select %p108, %s109, %s110
      %p114 = pneg %p108
      %p115 = scmp.eq.s32.totalorder %s15, 1
      %p116 = por %p114, %p115
      %p117 = scmp.ne.s32.totalorder %s109, %s112
      %p118 = scmp.eq.s32.totalorder %s15, 0
      %p119 = por %p117, %p118
      %p120 = scmp.ne.s32.totalorder %s109, %s112
      %p121 = scmp.eq.s32.totalorder %s20, 1
      %p122 = por %p120, %p121
      %p123 = scmp.ne.s32.totalorder %s112, %s113
      %p124 = scmp.eq.s32.totalorder %s20, 0
      %p125 = por %p123, %p124
      %p126 = scmp.ne.s32.totalorder %s112, %s113
      %p127 = scmp.eq.s32.totalorder %s21, 1
      %p128 = por %p126, %p127
      %p130 = scmp.ne.s32.totalorder %s113, %s129
      %p131 = scmp.eq.s32.totalorder %s21, 0
      %p132 = por %p130, %p131
      %p133 = scmp.le.s32.totalorder 1, %s15
      %p134 = scmp.lt.s32.totalorder %s15, 3
      %p135 = pnand %p133, %p134
      %p136 = pneg %p135
      // Predicated region
      $region9: #{tpu_custom_call.1} parent=5 // pred_check
        _
      $region10: #{tpu_custom_call.1} parent=5 // pred_check_branch
        %138 = sbr.rel (%p135) target = $region12
      $region11: #{tpu_custom_call.1} parent=5 // pred_region
        %s139 = ssub.s32 %s15, 1
        // Predicated region
        $region13: #{tpu_custom_call.1} parent=11 // pred_check
          %p140 = pneg %p76
        $region14: #{tpu_custom_call.1} parent=11 // pred_check_branch
          %142 = sbr.rel (%p140) target = $region16
        $region15: #{tpu_custom_call.1} parent=11 // pred_region
          _
        $region16: #{tpu_custom_call.1} parent=11 // pred_fallthru
          _
        // Predicated region
        $region17: #{tpu_custom_call.1} parent=11 // pred_check
          %p143 = pneg %p97
        $region18: #{tpu_custom_call.1} parent=11 // pred_check_branch
          %145 = sbr.rel (%p143) target = $region20
        $region19: #{tpu_custom_call.1} parent=11 // pred_region
          _
        $region20: #{tpu_custom_call.1} parent=11 // pred_fallthru
          _
      $region12: #{tpu_custom_call.1} parent=5 // pred_fallthru
        _
      %p146 = scmp.lt.s32.totalorder %s15, 2
      // Predicated region
      $region21: #{tpu_custom_call.1} parent=5 // pred_check
        %p147 = pneg %p146
      $region22: #{tpu_custom_call.1} parent=5 // pred_check_branch
        %149 = sbr.rel (%p147) target = $region24
      $region23: #{tpu_custom_call.1} parent=5 // pred_region
        // Predicated region
        $region25: #{tpu_custom_call.1} parent=23 // pred_check
          %p150 = pneg %p49
        $region26: #{tpu_custom_call.1} parent=23 // pred_check_branch
          %152 = sbr.rel (%p150) target = $region28
        $region27: #{tpu_custom_call.1} parent=23 // pred_region
          %s153 = sand.u32 %s39, 1
          %s154 = scalar_lea.sflag [#allocation3], %s153
          %s155 = sand.u32 %s39, 1
          %s156 = smul.addr %s155, 64
          %s157 = scalar_lea.vmem [#allocation2], %s156
          %s158 = smul.u32 4, %s23
          %s160 = ssub.s32 1024, 1024
          %161 = vsyncadd %s154, %s160
          %s162 = smul.addr %s158, 2
          %s163 = smul.addr %s22, 8
          %s164 = sadd.s32 %s162, %s163
          %s165 = smul.addr %s164, 128
          %s166 = scalar_lea.hbm %s0, %s165
          %s167 = sshll.u32 %s157, 4
          %s168 = int_to_ptr.vmem [resolvable:$true] %s167
          %173 = dma.hbm_to_vmem [thread:$0]  %s166, 1024, %s168, %s154, 256, 256, 16
        $region28: #{tpu_custom_call.1} parent=23 // pred_fallthru
          _
      $region24: #{tpu_custom_call.1} parent=5 // pred_fallthru
        _
      %p174 = scmp.le.s32.totalorder 1, %s15
      %p175 = scmp.lt.s32.totalorder %s15, 3
      %p176 = pnand %p174, %p175
      %p177 = pneg %p176
      // Predicated region
      $region29: #{tpu_custom_call.1} parent=5 // pred_check
        _
      $region30: #{tpu_custom_call.1} parent=5 // pred_check_branch
        %179 = sbr.rel (%p176) target = $region32
      $region31: #{tpu_custom_call.1} parent=5 // pred_region
        %s180 = ssub.s32 %s15, 1
        %s181 = sand.u32 %s42, 1
        %s182 = scalar_lea.sflag [#allocation3], %s181
        %s183 = sand.u32 %s42, 1
        %s184 = smul.addr %s183, 64
        %s185 = scalar_lea.vmem [#allocation2], %s184
        // Predicated region
        $region33: #{tpu_custom_call.1} parent=31 // pred_check
          %p186 = pneg %p55
        $region34: #{tpu_custom_call.1} parent=31 // pred_check_branch
          %188 = sbr.rel (%p186) target = $region36
        $region35: #{tpu_custom_call.1} parent=31 // pred_region
          %189 = dma.done %s182, 1024
        $region36: #{tpu_custom_call.1} parent=31 // pred_fallthru
          _
        %s190 = sand.u32 %s42, 1
        %s191 = scalar_lea.sflag [#allocation3], %s190
        %s192 = sand.u32 %s42, 1
        %s193 = smul.addr %s192, 64
        %s194 = scalar_lea.vmem [#allocation2], %s193
        %p195 = pneg %p55
        %p196 = pneg %p52
        %p197 = pneg %p76
        %p198 = pneg %p73
        %p199 = pneg %p97
        %p200 = pneg %p94
        %p201 = pneg %p125
        %p202 = pneg %p122
        %s203 = sand.u32 %s112, 1
        %s204 = scalar_lea.sflag [#allocation4], %s203
        %s205 = sand.u32 %s112, 1
        %s206 = smul.addr %s205, 64
        %s207 = scalar_lea.vmem [#allocation5], %s206
        %s208 = smul.u32 4, %s25
        %s209 = smul.u32 4, %s25
        %v210 = vld [vmem:[%s185] sm:$0xff]
        %v211 = vld [vmem:[%s185 + $0x8] sm:$0xff]
        %v212 = vld [vmem:[%s185 + $0x10] sm:$0xff]
        %v213 = vld [vmem:[%s185 + $0x18] sm:$0xff]
        %v214 = vld [vmem:[%s185 + $0x20] sm:$0xff]
        %v215 = vld [vmem:[%s185 + $0x28] sm:$0xff]
        %v216 = vld [vmem:[%s185 + $0x30] sm:$0xff]
        %v217 = vld [vmem:[%s185 + $0x38] sm:$0xff]
        %v218 = vlaneseq
        %v219 = vand.u32 %v218, 127
        %v220 = vlaneseq
        %v221 = vshrl.u32 %v220, 7
        %v222 = vadd.s32 %v221, 8
        %v223 = vmul.u32 %v221, 2
        %v224 = vmul.u32 %v222, 2
        %vm225 = vcmp.ge.s32.totalorder %v219, %v223
        %vm226 = vcmp.ge.s32.totalorder %v219, %v224
        %v227 = vadd.s32 %v223, 2
        %v228 = vadd.s32 %v224, 2
        %vm229 = vcmp.lt.s32.totalorder %v219, %v227
        %vm230 = vcmp.lt.s32.totalorder %v219, %v228
        %vm231 = vmand %vm225, %vm229
        %vm232 = vmand %vm226, %vm230
        %v233 = vsel %vm231, 1, 0
        %v234 = vsel %vm232, 1, 0
        %v235 = vcvt.s32.f32 %v233
        %v236 = vcvt.s32.f32 %v234
        %v237 = vadd.s32 %v221, 16
        %v238 = vadd.s32 %v221, 24
        %v239 = vmul.u32 %v219, 2
        %vm240 = vcmp.ge.s32.totalorder %v221, %v239
        %vm241 = vcmp.ge.s32.totalorder %v222, %v239
        %vm242 = vcmp.ge.s32.totalorder %v237, %v239
        %vm243 = vcmp.ge.s32.totalorder %v238, %v239
        %v244 = vadd.s32 %v239, 2
        %vm245 = vcmp.lt.s32.totalorder %v221, %v244
        %vm246 = vcmp.lt.s32.totalorder %v222, %v244
        %vm247 = vcmp.lt.s32.totalorder %v237, %v244
        %vm248 = vcmp.lt.s32.totalorder %v238, %v244
        %vm249 = vmand %vm240, %vm245
        %vm250 = vmand %vm241, %vm246
        %vm251 = vmand %vm242, %vm247
        %vm252 = vmand %vm243, %vm248
        %v253 = vsel %vm249, 1, 0
        %v254 = vsel %vm250, 1, 0
        %v255 = vsel %vm251, 1, 0
        %v256 = vsel %vm252, 1, 0
        %v257 = vcvt.s32.f32 %v253
        %v258 = vcvt.s32.f32 %v254
        %v259 = vcvt.s32.f32 %v255
        %v260 = vcvt.s32.f32 %v256
        %v261 = vadd.f32 %v210, %v211
        %262 = vadd.xlane.f32.xlu0 %v261
        %v263 = vpop.xlane.xlu0 %262
        %v264 = vadd.f32 %v212, %v213
        %265 = vadd.xlane.f32.xlu0 %v264
        %v266 = vpop.xlane.xlu0 %265
        %v267 = vadd.f32 %v214, %v215
        %268 = vadd.xlane.f32.xlu0 %v267
        %v269 = vpop.xlane.xlu0 %268
        %v270 = vadd.f32 %v216, %v217
        %271 = vadd.xlane.f32.xlu0 %v270
        %v272 = vpop.xlane.xlu0 %271
        %vm273 = vcmask 261120
        %v275 = vsel %vm273, %v235, 0
        %v278 = vsel %vm273, %v236, 0
        %280 = vmatprep.subr.mxu0 0.0
        %281 = vmatpush1.msra.mxu0 0.0
        %282 = vmatprep.subr.mxu0 0.0
        %283 = vmatpush1.msra.mxu0 0.0
        %284 = vmatprep.subr.mxu0 0.0
        %285 = vmatpush1.msra.mxu0 0.0
        %286 = vmatprep.subr.mxu0 0.0
        %287 = vmatpush1.msra.mxu0 0.0
        %288 = vmatprep.subr.mxu0 0.0
        %289 = vmatpush1.msra.mxu0 0.0
        %290 = vmatprep.subr.mxu0 0.0
        %291 = vmatpush1.msra.mxu0 0.0
        %292 = vmatprep.subr.mxu0 0.0
        %293 = vmatpush1.msra.mxu0 0.0
        %294 = vmatprep.subr.mxu0 0.0
        %295 = vmatpush1.msra.mxu0 0.0
        %296 = vmatprep.subr.mxu0 0.0
        %297 = vmatpush1.msra.mxu0 0.0
        %298 = vmatprep.subr.mxu0 0.0
        %299 = vmatpush1.msra.mxu0 0.0
        %300 = vmatprep.subr.mxu0 0.0
        %301 = vmatpush1.msra.mxu0 0.0
        %302 = vmatprep.subr.mxu0 0.0
        %303 = vmatpush1.msra.mxu0 0.0
        %304 = vmatprep.subr.mxu0 0.0
        %v305 = vand.u32 %v272, 4294901760
        %306 = vmatpush1.msra.mxu0 %v305
        %307 = vmatprep.subr.mxu0 0.0
        %v308 = vand.u32 %v269, 4294901760
        %309 = vmatpush1.msra.mxu0 %v308
        %310 = vmatprep.subr.mxu0 0.0
        %v311 = vand.u32 %v266, 4294901760
        %312 = vmatpush1.msra.mxu0 %v311
        %313 = vmatprep.subr.mxu0 0.0
        %v314 = vand.u32 %v263, 4294901760
        %315 = vmatpush1.msra.mxu0 %v314
        %316 = vmatprep.subr.mxu0 0.0
        %317 = vmatpush2.msra.mxu0 0.0
        %318 = vmatprep.subr.mxu0 0.0
        %319 = vmatpush2.msra.mxu0 0.0
        %320 = vmatprep.subr.mxu0 0.0
        %321 = vmatpush2.msra.mxu0 0.0
        %322 = vmatprep.subr.mxu0 0.0
        %323 = vmatpush2.msra.mxu0 0.0
        %324 = vmatprep.subr.mxu0 0.0
        %325 = vmatpush2.msra.mxu0 0.0
        %326 = vmatprep.subr.mxu0 0.0
        %327 = vmatpush2.msra.mxu0 0.0
        %328 = vmatprep.subr.mxu0 0.0
        %329 = vmatpush2.msra.mxu0 0.0
        %330 = vmatprep.subr.mxu0 0.0
        %331 = vmatpush2.msra.mxu0 0.0
        %332 = vmatprep.subr.mxu0 0.0
        %333 = vmatpush2.msra.mxu0 0.0
        %334 = vmatprep.subr.mxu0 0.0
        %335 = vmatpush2.msra.mxu0 0.0
        %336 = vmatprep.subr.mxu0 0.0
        %337 = vmatpush2.msra.mxu0 0.0
        %338 = vmatprep.subr.mxu0 0.0
        %339 = vmatpush2.msra.mxu0 0.0
        %340 = vmatprep.subr.mxu0 0.0
        %341 = vmatpush2.msra.mxu0 0.0
        %342 = vmatprep.subr.mxu0 0.0
        %343 = vmatpush2.msra.mxu0 0.0
        %344 = vmatprep.subr.mxu0 0.0
        %345 = vmatpush2.msra.mxu0 0.0
        %346 = vmatprep.subr.mxu0 0.0
        %347 = vmatpush2.msra.mxu0 0.0
        %348 = vmatprep.mubr.f32.mxu0 0.0
        %v349 = vand.u32 %v275, 4294901760
        %v350 = vsub.f32 %v275, %v349
        %v351 = vand.u32 %v350, 4294901760
        %v352 = vsub.f32 %v350, %v351
        %v353 = vand.u32 %v352, 4294901760
        %354 = vmatmul.mubr.f32.gmra.mxu0 %v353
        %v355 = vpop.f32.mrf.mxu0
        %v356 = vadd.f32 0.0, %v355
        %v357 = vpop.f32.mrf.mxu0
        %358 = vmatprep.mubr.f32.mxu0 0.0
        %v359 = vand.u32 %v278, 4294901760
        %v360 = vsub.f32 %v278, %v359
        %v361 = vand.u32 %v360, 4294901760
        %v362 = vsub.f32 %v360, %v361
        %v363 = vand.u32 %v362, 4294901760
        %364 = vmatmul.mubr.f32.gmra.mxu0 %v363
        %v365 = vpop.f32.mrf.mxu0
        %v366 = vadd.f32 0.0, %v365
        %v367 = vpop.f32.mrf.mxu0
        %368 = vdwg.mxu0
        %369 = vmatprep.subr.mxu0 0.0
        %370 = vmatpush1.msra.mxu0 0.0
        %371 = vmatprep.subr.mxu0 0.0
        %372 = vmatpush1.msra.mxu0 0.0
        %373 = vmatprep.subr.mxu0 0.0
        %374 = vmatpush1.msra.mxu0 0.0
        %375 = vmatprep.subr.mxu0 0.0
        %376 = vmatpush1.msra.mxu0 0.0
        %377 = vmatprep.subr.mxu0 0.0
        %378 = vmatpush1.msra.mxu0 0.0
        %379 = vmatprep.subr.mxu0 0.0
        %380 = vmatpush1.msra.mxu0 0.0
        %381 = vmatprep.subr.mxu0 0.0
        %382 = vmatpush1.msra.mxu0 0.0
        %383 = vmatprep.subr.mxu0 0.0
        %384 = vmatpush1.msra.mxu0 0.0
        %385 = vmatprep.subr.mxu0 0.0
        %386 = vmatpush1.msra.mxu0 0.0
        %387 = vmatprep.subr.mxu0 0.0
        %388 = vmatpush1.msra.mxu0 0.0
        %389 = vmatprep.subr.mxu0 0.0
        %390 = vmatpush1.msra.mxu0 0.0
        %391 = vmatprep.subr.mxu0 0.0
        %392 = vmatpush1.msra.mxu0 0.0
        %393 = vmatprep.subr.mxu0 0.0
        %v394 = vand.u32 %v272, 4294901760
        %v395 = vsub.f32 %v272, %v394
        %v396 = vand.u32 %v395, 4294901760
        %v397 = vsub.f32 %v395, %v396
        %v398 = vand.u32 %v397, 4294901760
        %399 = vmatpush1.msra.mxu0 %v398
        %400 = vmatprep.subr.mxu0 0.0
        %v401 = vand.u32 %v269, 4294901760
        %v402 = vsub.f32 %v269, %v401
        %v403 = vand.u32 %v402, 4294901760
        %v404 = vsub.f32 %v402, %v403
        %v405 = vand.u32 %v404, 4294901760
        %406 = vmatpush1.msra.mxu0 %v405
        %407 = vmatprep.subr.mxu0 0.0
        %v408 = vand.u32 %v266, 4294901760
        %v409 = vsub.f32 %v266, %v408
        %v410 = vand.u32 %v409, 4294901760
        %v411 = vsub.f32 %v409, %v410
        %v412 = vand.u32 %v411, 4294901760
        %413 = vmatpush1.msra.mxu0 %v412
        %414 = vmatprep.subr.mxu0 0.0
        %v415 = vand.u32 %v263, 4294901760
        %v416 = vsub.f32 %v263, %v415
        %v417 = vand.u32 %v416, 4294901760
        %v418 = vsub.f32 %v416, %v417
        %v419 = vand.u32 %v418, 4294901760
        %420 = vmatpush1.msra.mxu0 %v419
        %421 = vmatprep.subr.mxu0 0.0
        %422 = vmatpush2.msra.mxu0 0.0
        %423 = vmatprep.subr.mxu0 0.0
        %424 = vmatpush2.msra.mxu0 0.0
        %425 = vmatprep.subr.mxu0 0.0
        %426 = vmatpush2.msra.mxu0 0.0
        %427 = vmatprep.subr.mxu0 0.0
        %428 = vmatpush2.msra.mxu0 0.0
        %429 = vmatprep.subr.mxu0 0.0
        %430 = vmatpush2.msra.mxu0 0.0
        %431 = vmatprep.subr.mxu0 0.0
        %432 = vmatpush2.msra.mxu0 0.0
        %433 = vmatprep.subr.mxu0 0.0
        %434 = vmatpush2.msra.mxu0 0.0
        %435 = vmatprep.subr.mxu0 0.0
        %436 = vmatpush2.msra.mxu0 0.0
        %437 = vmatprep.subr.mxu0 0.0
        %438 = vmatpush2.msra.mxu0 0.0
        %439 = vmatprep.subr.mxu0 0.0
        %440 = vmatpush2.msra.mxu0 0.0
        %441 = vmatprep.subr.mxu0 0.0
        %442 = vmatpush2.msra.mxu0 0.0
        %443 = vmatprep.subr.mxu0 0.0
        %444 = vmatpush2.msra.mxu0 0.0
        %445 = vmatprep.subr.mxu0 0.0
        %446 = vmatpush2.msra.mxu0 0.0
        %447 = vmatprep.subr.mxu0 0.0
        %448 = vmatpush2.msra.mxu0 0.0
        %449 = vmatprep.subr.mxu0 0.0
        %450 = vmatpush2.msra.mxu0 0.0
        %451 = vmatprep.subr.mxu0 0.0
        %452 = vmatpush2.msra.mxu0 0.0
        %453 = vmatprep.mubr.f32.mxu0 0.0
        %v454 = vand.u32 %v275, 4294901760
        %455 = vmatmul.mubr.f32.gmra.mxu0 %v454
        %v456 = vpop.f32.mrf.mxu0
        %v457 = vadd.f32 %v356, %v456
        %v458 = vpop.f32.mrf.mxu0
        %459 = vmatprep.mubr.f32.mxu0 0.0
        %v460 = vand.u32 %v278, 4294901760
        %461 = vmatmul.mubr.f32.gmra.mxu0 %v460
        %v462 = vpop.f32.mrf.mxu0
        %v463 = vadd.f32 %v366, %v462
        %v464 = vpop.f32.mrf.mxu0
        %465 = vdwg.mxu0
        %466 = vmatprep.subr.mxu0 0.0
        %467 = vmatpush1.msra.mxu0 0.0
        %468 = vmatprep.subr.mxu0 0.0
        %469 = vmatpush1.msra.mxu0 0.0
        %470 = vmatprep.subr.mxu0 0.0
        %471 = vmatpush1.msra.mxu0 0.0
        %472 = vmatprep.subr.mxu0 0.0
        %473 = vmatpush1.msra.mxu0 0.0
        %474 = vmatprep.subr.mxu0 0.0
        %475 = vmatpush1.msra.mxu0 0.0
        %476 = vmatprep.subr.mxu0 0.0
        %477 = vmatpush1.msra.mxu0 0.0
        %478 = vmatprep.subr.mxu0 0.0
        %479 = vmatpush1.msra.mxu0 0.0
        %480 = vmatprep.subr.mxu0 0.0
        %481 = vmatpush1.msra.mxu0 0.0
        %482 = vmatprep.subr.mxu0 0.0
        %483 = vmatpush1.msra.mxu0 0.0
        %484 = vmatprep.subr.mxu0 0.0
        %485 = vmatpush1.msra.mxu0 0.0
        %486 = vmatprep.subr.mxu0 0.0
        %487 = vmatpush1.msra.mxu0 0.0
        %488 = vmatprep.subr.mxu0 0.0
        %489 = vmatpush1.msra.mxu0 0.0
        %490 = vmatprep.subr.mxu0 0.0
        %v491 = vand.u32 %v272, 4294901760
        %v492 = vsub.f32 %v272, %v491
        %493 = vmatpush1.msra.mxu0 %v492
        %494 = vmatprep.subr.mxu0 0.0
        %v495 = vand.u32 %v269, 4294901760
        %v496 = vsub.f32 %v269, %v495
        %497 = vmatpush1.msra.mxu0 %v496
        %498 = vmatprep.subr.mxu0 0.0
        %v499 = vand.u32 %v266, 4294901760
        %v500 = vsub.f32 %v266, %v499
        %501 = vmatpush1.msra.mxu0 %v500
        %502 = vmatprep.subr.mxu0 0.0
        %v503 = vand.u32 %v263, 4294901760
        %v504 = vsub.f32 %v263, %v503
        %505 = vmatpush1.msra.mxu0 %v504
        %506 = vmatprep.subr.mxu0 0.0
        %507 = vmatpush2.msra.mxu0 0.0
        %508 = vmatprep.subr.mxu0 0.0
        %509 = vmatpush2.msra.mxu0 0.0
        %510 = vmatprep.subr.mxu0 0.0
        %511 = vmatpush2.msra.mxu0 0.0
        %512 = vmatprep.subr.mxu0 0.0
        %513 = vmatpush2.msra.mxu0 0.0
        %514 = vmatprep.subr.mxu0 0.0
        %515 = vmatpush2.msra.mxu0 0.0
        %516 = vmatprep.subr.mxu0 0.0
        %517 = vmatpush2.msra.mxu0 0.0
        %518 = vmatprep.subr.mxu0 0.0
        %519 = vmatpush2.msra.mxu0 0.0
        %520 = vmatprep.subr.mxu0 0.0
        %521 = vmatpush2.msra.mxu0 0.0
        %522 = vmatprep.subr.mxu0 0.0
        %523 = vmatpush2.msra.mxu0 0.0
        %524 = vmatprep.subr.mxu0 0.0
        %525 = vmatpush2.msra.mxu0 0.0
        %526 = vmatprep.subr.mxu0 0.0
        %527 = vmatpush2.msra.mxu0 0.0
        %528 = vmatprep.subr.mxu0 0.0
        %529 = vmatpush2.msra.mxu0 0.0
        %530 = vmatprep.subr.mxu0 0.0
        %531 = vmatpush2.msra.mxu0 0.0
        %532 = vmatprep.subr.mxu0 0.0
        %533 = vmatpush2.msra.mxu0 0.0
        %534 = vmatprep.subr.mxu0 0.0
        %535 = vmatpush2.msra.mxu0 0.0
        %536 = vmatprep.subr.mxu0 0.0
        %537 = vmatpush2.msra.mxu0 0.0
        %538 = vmatprep.mubr.f32.mxu0 0.0
        %v539 = vand.u32 %v275, 4294901760
        %v540 = vsub.f32 %v275, %v539
        %541 = vmatmul.mubr.f32.gmra.mxu0 %v540
        %v542 = vpop.f32.mrf.mxu0
        %v543 = vadd.f32 %v457, %v542
        %v544 = vpop.f32.mrf.mxu0
        %545 = vmatprep.mubr.f32.mxu0 0.0
        %v546 = vand.u32 %v278, 4294901760
        %v547 = vsub.f32 %v278, %v546
        %548 = vmatmul.mubr.f32.gmra.mxu0 %v547
        %v549 = vpop.f32.mrf.mxu0
        %v550 = vadd.f32 %v463, %v549
        %v551 = vpop.f32.mrf.mxu0
        %552 = vdwg.mxu0
        %553 = vmatprep.subr.mxu0 0.0
        %554 = vmatpush1.msra.mxu0 0.0
        %555 = vmatprep.subr.mxu0 0.0
        %556 = vmatpush1.msra.mxu0 0.0
        %557 = vmatprep.subr.mxu0 0.0
        %558 = vmatpush1.msra.mxu0 0.0
        %559 = vmatprep.subr.mxu0 0.0
        %560 = vmatpush1.msra.mxu0 0.0
        %561 = vmatprep.subr.mxu0 0.0
        %562 = vmatpush1.msra.mxu0 0.0
        %563 = vmatprep.subr.mxu0 0.0
        %564 = vmatpush1.msra.mxu0 0.0
        %565 = vmatprep.subr.mxu0 0.0
        %566 = vmatpush1.msra.mxu0 0.0
        %567 = vmatprep.subr.mxu0 0.0
        %568 = vmatpush1.msra.mxu0 0.0
        %569 = vmatprep.subr.mxu0 0.0
        %570 = vmatpush1.msra.mxu0 0.0
        %571 = vmatprep.subr.mxu0 0.0
        %572 = vmatpush1.msra.mxu0 0.0
        %573 = vmatprep.subr.mxu0 0.0
        %574 = vmatpush1.msra.mxu0 0.0
        %575 = vmatprep.subr.mxu0 0.0
        %576 = vmatpush1.msra.mxu0 0.0
        %577 = vmatprep.subr.mxu0 0.0
        %v578 = vand.u32 %v272, 4294901760
        %579 = vmatpush1.msra.mxu0 %v578
        %580 = vmatprep.subr.mxu0 0.0
        %v581 = vand.u32 %v269, 4294901760
        %582 = vmatpush1.msra.mxu0 %v581
        %583 = vmatprep.subr.mxu0 0.0
        %v584 = vand.u32 %v266, 4294901760
        %585 = vmatpush1.msra.mxu0 %v584
        %586 = vmatprep.subr.mxu0 0.0
        %v587 = vand.u32 %v263, 4294901760
        %588 = vmatpush1.msra.mxu0 %v587
        %589 = vmatprep.subr.mxu0 0.0
        %590 = vmatpush2.msra.mxu0 0.0
        %591 = vmatprep.subr.mxu0 0.0
        %592 = vmatpush2.msra.mxu0 0.0
        %593 = vmatprep.subr.mxu0 0.0
        %594 = vmatpush2.msra.mxu0 0.0
        %595 = vmatprep.subr.mxu0 0.0
        %596 = vmatpush2.msra.mxu0 0.0
        %597 = vmatprep.subr.mxu0 0.0
        %598 = vmatpush2.msra.mxu0 0.0
        %599 = vmatprep.subr.mxu0 0.0
        %600 = vmatpush2.msra.mxu0 0.0
        %601 = vmatprep.subr.mxu0 0.0
        %602 = vmatpush2.msra.mxu0 0.0
        %603 = vmatprep.subr.mxu0 0.0
        %604 = vmatpush2.msra.mxu0 0.0
        %605 = vmatprep.subr.mxu0 0.0
        %606 = vmatpush2.msra.mxu0 0.0
        %607 = vmatprep.subr.mxu0 0.0
        %608 = vmatpush2.msra.mxu0 0.0
        %609 = vmatprep.subr.mxu0 0.0
        %610 = vmatpush2.msra.mxu0 0.0
        %611 = vmatprep.subr.mxu0 0.0
        %612 = vmatpush2.msra.mxu0 0.0
        %613 = vmatprep.subr.mxu0 0.0
        %614 = vmatpush2.msra.mxu0 0.0
        %615 = vmatprep.subr.mxu0 0.0
        %616 = vmatpush2.msra.mxu0 0.0
        %617 = vmatprep.subr.mxu0 0.0
        %618 = vmatpush2.msra.mxu0 0.0
        %619 = vmatprep.subr.mxu0 0.0
        %620 = vmatpush2.msra.mxu0 0.0
        %621 = vmatprep.mubr.f32.mxu0 0.0
        %v622 = vand.u32 %v275, 4294901760
        %v623 = vsub.f32 %v275, %v622
        %v624 = vand.u32 %v623, 4294901760
        %625 = vmatmul.mubr.f32.gmra.mxu0 %v624
        %v626 = vpop.f32.mrf.mxu0
        %v627 = vadd.f32 %v543, %v626
        %v628 = vpop.f32.mrf.mxu0
        %629 = vmatprep.mubr.f32.mxu0 0.0
        %v630 = vand.u32 %v278, 4294901760
        %v631 = vsub.f32 %v278, %v630
        %v632 = vand.u32 %v631, 4294901760
        %633 = vmatmul.mubr.f32.gmra.mxu0 %v632
        %v634 = vpop.f32.mrf.mxu0
        %v635 = vadd.f32 %v550, %v634
        %v636 = vpop.f32.mrf.mxu0
        %637 = vdwg.mxu0
        %638 = vmatprep.subr.mxu0 0.0
        %639 = vmatpush1.msra.mxu0 0.0
        %640 = vmatprep.subr.mxu0 0.0
        %641 = vmatpush1.msra.mxu0 0.0
        %642 = vmatprep.subr.mxu0 0.0
        %643 = vmatpush1.msra.mxu0 0.0
        %644 = vmatprep.subr.mxu0 0.0
        %645 = vmatpush1.msra.mxu0 0.0
        %646 = vmatprep.subr.mxu0 0.0
        %647 = vmatpush1.msra.mxu0 0.0
        %648 = vmatprep.subr.mxu0 0.0
        %649 = vmatpush1.msra.mxu0 0.0
        %650 = vmatprep.subr.mxu0 0.0
        %651 = vmatpush1.msra.mxu0 0.0
        %652 = vmatprep.subr.mxu0 0.0
        %653 = vmatpush1.msra.mxu0 0.0
        %654 = vmatprep.subr.mxu0 0.0
        %655 = vmatpush1.msra.mxu0 0.0
        %656 = vmatprep.subr.mxu0 0.0
        %657 = vmatpush1.msra.mxu0 0.0
        %658 = vmatprep.subr.mxu0 0.0
        %659 = vmatpush1.msra.mxu0 0.0
        %660 = vmatprep.subr.mxu0 0.0
        %661 = vmatpush1.msra.mxu0 0.0
        %662 = vmatprep.subr.mxu0 0.0
        %v663 = vand.u32 %v272, 4294901760
        %v664 = vsub.f32 %v272, %v663
        %v665 = vand.u32 %v664, 4294901760
        %666 = vmatpush1.msra.mxu0 %v665
        %667 = vmatprep.subr.mxu0 0.0
        %v668 = vand.u32 %v269, 4294901760
        %v669 = vsub.f32 %v269, %v668
        %v670 = vand.u32 %v669, 4294901760
        %671 = vmatpush1.msra.mxu0 %v670
        %672 = vmatprep.subr.mxu0 0.0
        %v673 = vand.u32 %v266, 4294901760
        %v674 = vsub.f32 %v266, %v673
        %v675 = vand.u32 %v674, 4294901760
        %676 = vmatpush1.msra.mxu0 %v675
        %677 = vmatprep.subr.mxu0 0.0
        %v678 = vand.u32 %v263, 4294901760
        %v679 = vsub.f32 %v263, %v678
        %v680 = vand.u32 %v679, 4294901760
        %681 = vmatpush1.msra.mxu0 %v680
        %682 = vmatprep.subr.mxu0 0.0
        %683 = vmatpush2.msra.mxu0 0.0
        %684 = vmatprep.subr.mxu0 0.0
        %685 = vmatpush2.msra.mxu0 0.0
        %686 = vmatprep.subr.mxu0 0.0
        %687 = vmatpush2.msra.mxu0 0.0
        %688 = vmatprep.subr.mxu0 0.0
        %689 = vmatpush2.msra.mxu0 0.0
        %690 = vmatprep.subr.mxu0 0.0
        %691 = vmatpush2.msra.mxu0 0.0
        %692 = vmatprep.subr.mxu0 0.0
        %693 = vmatpush2.msra.mxu0 0.0
        %694 = vmatprep.subr.mxu0 0.0
        %695 = vmatpush2.msra.mxu0 0.0
        %696 = vmatprep.subr.mxu0 0.0
        %697 = vmatpush2.msra.mxu0 0.0
        %698 = vmatprep.subr.mxu0 0.0
        %699 = vmatpush2.msra.mxu0 0.0
        %700 = vmatprep.subr.mxu0 0.0
        %701 = vmatpush2.msra.mxu0 0.0
        %702 = vmatprep.subr.mxu0 0.0
        %703 = vmatpush2.msra.mxu0 0.0
        %704 = vmatprep.subr.mxu0 0.0
        %705 = vmatpush2.msra.mxu0 0.0
        %706 = vmatprep.subr.mxu0 0.0
        %707 = vmatpush2.msra.mxu0 0.0
        %708 = vmatprep.subr.mxu0 0.0
        %709 = vmatpush2.msra.mxu0 0.0
        %710 = vmatprep.subr.mxu0 0.0
        %711 = vmatpush2.msra.mxu0 0.0
        %712 = vmatprep.subr.mxu0 0.0
        %713 = vmatpush2.msra.mxu0 0.0
        %714 = vmatprep.mubr.f32.mxu0 0.0
        %v715 = vand.u32 %v275, 4294901760
        %716 = vmatmul.mubr.f32.gmra.mxu0 %v715
        %v717 = vpop.f32.mrf.mxu0
        %v718 = vadd.f32 %v627, %v717
        %v719 = vpop.f32.mrf.mxu0
        %720 = vmatprep.mubr.f32.mxu0 0.0
        %v721 = vand.u32 %v278, 4294901760
        %722 = vmatmul.mubr.f32.gmra.mxu0 %v721
        %v723 = vpop.f32.mrf.mxu0
        %v724 = vadd.f32 %v635, %v723
        %v725 = vpop.f32.mrf.mxu0
        %726 = vdwg.mxu0
        %727 = vmatprep.subr.mxu0 0.0
        %728 = vmatpush1.msra.mxu0 0.0
        %729 = vmatprep.subr.mxu0 0.0
        %730 = vmatpush1.msra.mxu0 0.0
        %731 = vmatprep.subr.mxu0 0.0
        %732 = vmatpush1.msra.mxu0 0.0
        %733 = vmatprep.subr.mxu0 0.0
        %734 = vmatpush1.msra.mxu0 0.0
        %735 = vmatprep.subr.mxu0 0.0
        %736 = vmatpush1.msra.mxu0 0.0
        %737 = vmatprep.subr.mxu0 0.0
        %738 = vmatpush1.msra.mxu0 0.0
        %739 = vmatprep.subr.mxu0 0.0
        %740 = vmatpush1.msra.mxu0 0.0
        %741 = vmatprep.subr.mxu0 0.0
        %742 = vmatpush1.msra.mxu0 0.0
        %743 = vmatprep.subr.mxu0 0.0
        %744 = vmatpush1.msra.mxu0 0.0
        %745 = vmatprep.subr.mxu0 0.0
        %746 = vmatpush1.msra.mxu0 0.0
        %747 = vmatprep.subr.mxu0 0.0
        %748 = vmatpush1.msra.mxu0 0.0
        %749 = vmatprep.subr.mxu0 0.0
        %750 = vmatpush1.msra.mxu0 0.0
        %751 = vmatprep.subr.mxu0 0.0
        %v752 = vand.u32 %v272, 4294901760
        %753 = vmatpush1.msra.mxu0 %v752
        %754 = vmatprep.subr.mxu0 0.0
        %v755 = vand.u32 %v269, 4294901760
        %756 = vmatpush1.msra.mxu0 %v755
        %757 = vmatprep.subr.mxu0 0.0
        %v758 = vand.u32 %v266, 4294901760
        %759 = vmatpush1.msra.mxu0 %v758
        %760 = vmatprep.subr.mxu0 0.0
        %v761 = vand.u32 %v263, 4294901760
        %762 = vmatpush1.msra.mxu0 %v761
        %763 = vmatprep.subr.mxu0 0.0
        %764 = vmatpush2.msra.mxu0 0.0
        %765 = vmatprep.subr.mxu0 0.0
        %766 = vmatpush2.msra.mxu0 0.0
        %767 = vmatprep.subr.mxu0 0.0
        %768 = vmatpush2.msra.mxu0 0.0
        %769 = vmatprep.subr.mxu0 0.0
        %770 = vmatpush2.msra.mxu0 0.0
        %771 = vmatprep.subr.mxu0 0.0
        %772 = vmatpush2.msra.mxu0 0.0
        %773 = vmatprep.subr.mxu0 0.0
        %774 = vmatpush2.msra.mxu0 0.0
        %775 = vmatprep.subr.mxu0 0.0
        %776 = vmatpush2.msra.mxu0 0.0
        %777 = vmatprep.subr.mxu0 0.0
        %778 = vmatpush2.msra.mxu0 0.0
        %779 = vmatprep.subr.mxu0 0.0
        %780 = vmatpush2.msra.mxu0 0.0
        %781 = vmatprep.subr.mxu0 0.0
        %782 = vmatpush2.msra.mxu0 0.0
        %783 = vmatprep.subr.mxu0 0.0
        %784 = vmatpush2.msra.mxu0 0.0
        %785 = vmatprep.subr.mxu0 0.0
        %786 = vmatpush2.msra.mxu0 0.0
        %787 = vmatprep.subr.mxu0 0.0
        %788 = vmatpush2.msra.mxu0 0.0
        %789 = vmatprep.subr.mxu0 0.0
        %790 = vmatpush2.msra.mxu0 0.0
        %791 = vmatprep.subr.mxu0 0.0
        %792 = vmatpush2.msra.mxu0 0.0
        %793 = vmatprep.subr.mxu0 0.0
        %794 = vmatpush2.msra.mxu0 0.0
        %795 = vmatprep.mubr.f32.mxu0 0.0
        %v796 = vand.u32 %v275, 4294901760
        %797 = vmatmul.mubr.f32.gmra.mxu0 %v796
        %v798 = vpop.f32.mrf.mxu0
        %v799 = vadd.f32 %v718, %v798
        %v800 = vpop.f32.mrf.mxu0
        %801 = vmatprep.mubr.f32.mxu0 0.0
        %v802 = vand.u32 %v278, 4294901760
        %803 = vmatmul.mubr.f32.gmra.mxu0 %v802
        %v804 = vpop.f32.mrf.mxu0
        %v805 = vadd.f32 %v724, %v804
        %v806 = vpop.f32.mrf.mxu0
        %807 = vdwg.mxu0
        %v808 = vmul.f32 %v799, 0.001953125
        %v809 = vmul.f32 %v805, 0.001953125
        %vm810 = vcmask 130048
        %v812 = vsel %vm810, %v257, 0
        %v815 = vsel %vm810, %v258, 0
        %v818 = vsel %vm810, %v259, 0
        %v821 = vsel %vm810, %v260, 0
        %823 = vmatprep.subr.mxu0 0.0
        %824 = vmatpush1.msra.mxu0 0.0
        %825 = vmatprep.subr.mxu0 0.0
        %826 = vmatpush1.msra.mxu0 0.0
        %827 = vmatprep.subr.mxu0 0.0
        %828 = vmatpush1.msra.mxu0 0.0
        %829 = vmatprep.subr.mxu0 0.0
        %830 = vmatpush1.msra.mxu0 0.0
        %831 = vmatprep.subr.mxu0 0.0
        %832 = vmatpush1.msra.mxu0 0.0
        %833 = vmatprep.subr.mxu0 0.0
        %834 = vmatpush1.msra.mxu0 0.0
        %835 = vmatprep.subr.mxu0 0.0
        %836 = vmatpush1.msra.mxu0 0.0
        %837 = vmatprep.subr.mxu0 0.0
        %838 = vmatpush1.msra.mxu0 0.0
        %839 = vmatprep.subr.mxu0 0.0
        %840 = vmatpush1.msra.mxu0 0.0
        %841 = vmatprep.subr.mxu0 0.0
        %842 = vmatpush1.msra.mxu0 0.0
        %843 = vmatprep.subr.mxu0 0.0
        %844 = vmatpush1.msra.mxu0 0.0
        %845 = vmatprep.subr.mxu0 0.0
        %846 = vmatpush1.msra.mxu0 0.0
        %847 = vmatprep.subr.mxu0 0.0
        %848 = vmatpush1.msra.mxu0 0.0
        %849 = vmatprep.subr.mxu0 0.0
        %850 = vmatpush1.msra.mxu0 0.0
        %851 = vmatprep.subr.mxu0 0.0
        %v852 = vand.u32 %v809, 4294901760
        %853 = vmatpush1.msra.mxu0 %v852
        %854 = vmatprep.subr.mxu0 0.0
        %v855 = vand.u32 %v808, 4294901760
        %856 = vmatpush1.msra.mxu0 %v855
        %857 = vmatprep.subr.mxu0 0.0
        %858 = vmatpush2.msra.mxu0 0.0
        %859 = vmatprep.subr.mxu0 0.0
        %860 = vmatpush2.msra.mxu0 0.0
        %861 = vmatprep.subr.mxu0 0.0
        %862 = vmatpush2.msra.mxu0 0.0
        %863 = vmatprep.subr.mxu0 0.0
        %864 = vmatpush2.msra.mxu0 0.0
        %865 = vmatprep.subr.mxu0 0.0
        %866 = vmatpush2.msra.mxu0 0.0
        %867 = vmatprep.subr.mxu0 0.0
        %868 = vmatpush2.msra.mxu0 0.0
        %869 = vmatprep.subr.mxu0 0.0
        %870 = vmatpush2.msra.mxu0 0.0
        %871 = vmatprep.subr.mxu0 0.0
        %872 = vmatpush2.msra.mxu0 0.0
        %873 = vmatprep.subr.mxu0 0.0
        %874 = vmatpush2.msra.mxu0 0.0
        %875 = vmatprep.subr.mxu0 0.0
        %876 = vmatpush2.msra.mxu0 0.0
        %877 = vmatprep.subr.mxu0 0.0
        %878 = vmatpush2.msra.mxu0 0.0
        %879 = vmatprep.subr.mxu0 0.0
        %880 = vmatpush2.msra.mxu0 0.0
        %881 = vmatprep.subr.mxu0 0.0
        %882 = vmatpush2.msra.mxu0 0.0
        %883 = vmatprep.subr.mxu0 0.0
        %884 = vmatpush2.msra.mxu0 0.0
        %885 = vmatprep.subr.mxu0 0.0
        %886 = vmatpush2.msra.mxu0 0.0
        %887 = vmatprep.subr.mxu0 0.0
        %888 = vmatpush2.msra.mxu0 0.0
        %889 = vmatprep.mubr.f32.mxu0 0.0
        %v890 = vand.u32 %v812, 4294901760
        %v891 = vsub.f32 %v812, %v890
        %v892 = vand.u32 %v891, 4294901760
        %v893 = vsub.f32 %v891, %v892
        %v894 = vand.u32 %v893, 4294901760
        %895 = vmatmul.mubr.f32.gmra.mxu0 %v894
        %v896 = vpop.f32.mrf.mxu0
        %v897 = vadd.f32 0.0, %v896
        %v898 = vpop.f32.mrf.mxu0
        %899 = vmatprep.mubr.f32.mxu0 0.0
        %v900 = vand.u32 %v815, 4294901760
        %v901 = vsub.f32 %v815, %v900
        %v902 = vand.u32 %v901, 4294901760
        %v903 = vsub.f32 %v901, %v902
        %v904 = vand.u32 %v903, 4294901760
        %905 = vmatmul.mubr.f32.gmra.mxu0 %v904
        %v906 = vpop.f32.mrf.mxu0
        %v907 = vadd.f32 0.0, %v906
        %v908 = vpop.f32.mrf.mxu0
        %909 = vmatprep.mubr.f32.mxu0 0.0
        %v910 = vand.u32 %v818, 4294901760
        %v911 = vsub.f32 %v818, %v910
        %v912 = vand.u32 %v911, 4294901760
        %v913 = vsub.f32 %v911, %v912
        %v914 = vand.u32 %v913, 4294901760
        %915 = vmatmul.mubr.f32.gmra.mxu0 %v914
        %v916 = vpop.f32.mrf.mxu0
        %v917 = vadd.f32 0.0, %v916
        %v918 = vpop.f32.mrf.mxu0
        %919 = vmatprep.mubr.f32.mxu0 0.0
        %v920 = vand.u32 %v821, 4294901760
        %v921 = vsub.f32 %v821, %v920
        %v922 = vand.u32 %v921, 4294901760
        %v923 = vsub.f32 %v921, %v922
        %v924 = vand.u32 %v923, 4294901760
        %925 = vmatmul.mubr.f32.gmra.mxu0 %v924
        %v926 = vpop.f32.mrf.mxu0
        %v927 = vadd.f32 0.0, %v926
        %v928 = vpop.f32.mrf.mxu0
        %929 = vdwg.mxu0
        %930 = vmatprep.subr.mxu0 0.0
        %931 = vmatpush1.msra.mxu0 0.0
        %932 = vmatprep.subr.mxu0 0.0
        %933 = vmatpush1.msra.mxu0 0.0
        %934 = vmatprep.subr.mxu0 0.0
        %935 = vmatpush1.msra.mxu0 0.0
        %936 = vmatprep.subr.mxu0 0.0
        %937 = vmatpush1.msra.mxu0 0.0
        %938 = vmatprep.subr.mxu0 0.0
        %939 = vmatpush1.msra.mxu0 0.0
        %940 = vmatprep.subr.mxu0 0.0
        %941 = vmatpush1.msra.mxu0 0.0
        %942 = vmatprep.subr.mxu0 0.0
        %943 = vmatpush1.msra.mxu0 0.0
        %944 = vmatprep.subr.mxu0 0.0
        %945 = vmatpush1.msra.mxu0 0.0
        %946 = vmatprep.subr.mxu0 0.0
        %947 = vmatpush1.msra.mxu0 0.0
        %948 = vmatprep.subr.mxu0 0.0
        %949 = vmatpush1.msra.mxu0 0.0
        %950 = vmatprep.subr.mxu0 0.0
        %951 = vmatpush1.msra.mxu0 0.0
        %952 = vmatprep.subr.mxu0 0.0
        %953 = vmatpush1.msra.mxu0 0.0
        %954 = vmatprep.subr.mxu0 0.0
        %955 = vmatpush1.msra.mxu0 0.0
        %956 = vmatprep.subr.mxu0 0.0
        %957 = vmatpush1.msra.mxu0 0.0
        %958 = vmatprep.subr.mxu0 0.0
        %v959 = vand.u32 %v809, 4294901760
        %v960 = vsub.f32 %v809, %v959
        %v961 = vand.u32 %v960, 4294901760
        %v962 = vsub.f32 %v960, %v961
        %v963 = vand.u32 %v962, 4294901760
        %964 = vmatpush1.msra.mxu0 %v963
        %965 = vmatprep.subr.mxu0 0.0
        %v966 = vand.u32 %v808, 4294901760
        %v967 = vsub.f32 %v808, %v966
        %v968 = vand.u32 %v967, 4294901760
        %v969 = vsub.f32 %v967, %v968
        %v970 = vand.u32 %v969, 4294901760
        %971 = vmatpush1.msra.mxu0 %v970
        %972 = vmatprep.subr.mxu0 0.0
        %973 = vmatpush2.msra.mxu0 0.0
        %974 = vmatprep.subr.mxu0 0.0
        %975 = vmatpush2.msra.mxu0 0.0
        %976 = vmatprep.subr.mxu0 0.0
        %977 = vmatpush2.msra.mxu0 0.0
        %978 = vmatprep.subr.mxu0 0.0
        %979 = vmatpush2.msra.mxu0 0.0
        %980 = vmatprep.subr.mxu0 0.0
        %981 = vmatpush2.msra.mxu0 0.0
        %982 = vmatprep.subr.mxu0 0.0
        %983 = vmatpush2.msra.mxu0 0.0
        %984 = vmatprep.subr.mxu0 0.0
        %985 = vmatpush2.msra.mxu0 0.0
        %986 = vmatprep.subr.mxu0 0.0
        %987 = vmatpush2.msra.mxu0 0.0
        %988 = vmatprep.subr.mxu0 0.0
        %989 = vmatpush2.msra.mxu0 0.0
        %990 = vmatprep.subr.mxu0 0.0
        %991 = vmatpush2.msra.mxu0 0.0
        %992 = vmatprep.subr.mxu0 0.0
        %993 = vmatpush2.msra.mxu0 0.0
        %994 = vmatprep.subr.mxu0 0.0
        %995 = vmatpush2.msra.mxu0 0.0
        %996 = vmatprep.subr.mxu0 0.0
        %997 = vmatpush2.msra.mxu0 0.0
        %998 = vmatprep.subr.mxu0 0.0
        %999 = vmatpush2.msra.mxu0 0.0
        %1000 = vmatprep.subr.mxu0 0.0
        %1001 = vmatpush2.msra.mxu0 0.0
        %1002 = vmatprep.subr.mxu0 0.0
        %1003 = vmatpush2.msra.mxu0 0.0
        %1004 = vmatprep.mubr.f32.mxu0 0.0
        %v1005 = vand.u32 %v812, 4294901760
        %1006 = vmatmul.mubr.f32.gmra.mxu0 %v1005
        %v1007 = vpop.f32.mrf.mxu0
        %v1008 = vadd.f32 %v897, %v1007
        %v1009 = vpop.f32.mrf.mxu0
        %1010 = vmatprep.mubr.f32.mxu0 0.0
        %v1011 = vand.u32 %v815, 4294901760
        %1012 = vmatmul.mubr.f32.gmra.mxu0 %v1011
        %v1013 = vpop.f32.mrf.mxu0
        %v1014 = vadd.f32 %v907, %v1013
        %v1015 = vpop.f32.mrf.mxu0
        %1016 = vmatprep.mubr.f32.mxu0 0.0
        %v1017 = vand.u32 %v818, 4294901760
        %1018 = vmatmul.mubr.f32.gmra.mxu0 %v1017
        %v1019 = vpop.f32.mrf.mxu0
        %v1020 = vadd.f32 %v917, %v1019
        %v1021 = vpop.f32.mrf.mxu0
        %1022 = vmatprep.mubr.f32.mxu0 0.0
        %v1023 = vand.u32 %v821, 4294901760
        %1024 = vmatmul.mubr.f32.gmra.mxu0 %v1023
        %v1025 = vpop.f32.mrf.mxu0
        %v1026 = vadd.f32 %v927, %v1025
        %v1027 = vpop.f32.mrf.mxu0
        %1028 = vdwg.mxu0
        %1029 = vmatprep.subr.mxu0 0.0
        %1030 = vmatpush1.msra.mxu0 0.0
        %1031 = vmatprep.subr.mxu0 0.0
        %1032 = vmatpush1.msra.mxu0 0.0
        %1033 = vmatprep.subr.mxu0 0.0
        %1034 = vmatpush1.msra.mxu0 0.0
        %1035 = vmatprep.subr.mxu0 0.0
        %1036 = vmatpush1.msra.mxu0 0.0
        %1037 = vmatprep.subr.mxu0 0.0
        %1038 = vmatpush1.msra.mxu0 0.0
        %1039 = vmatprep.subr.mxu0 0.0
        %1040 = vmatpush1.msra.mxu0 0.0
        %1041 = vmatprep.subr.mxu0 0.0
        %1042 = vmatpush1.msra.mxu0 0.0
        %1043 = vmatprep.subr.mxu0 0.0
        %1044 = vmatpush1.msra.mxu0 0.0
        %1045 = vmatprep.subr.mxu0 0.0
        %1046 = vmatpush1.msra.mxu0 0.0
        %1047 = vmatprep.subr.mxu0 0.0
        %1048 = vmatpush1.msra.mxu0 0.0
        %1049 = vmatprep.subr.mxu0 0.0
        %1050 = vmatpush1.msra.mxu0 0.0
        %1051 = vmatprep.subr.mxu0 0.0
        %1052 = vmatpush1.msra.mxu0 0.0
        %1053 = vmatprep.subr.mxu0 0.0
        %1054 = vmatpush1.msra.mxu0 0.0
        %1055 = vmatprep.subr.mxu0 0.0
        %1056 = vmatpush1.msra.mxu0 0.0
        %1057 = vmatprep.subr.mxu0 0.0
        %v1058 = vand.u32 %v809, 4294901760
        %v1059 = vsub.f32 %v809, %v1058
        %1060 = vmatpush1.msra.mxu0 %v1059
        %1061 = vmatprep.subr.mxu0 0.0
        %v1062 = vand.u32 %v808, 4294901760
        %v1063 = vsub.f32 %v808, %v1062
        %1064 = vmatpush1.msra.mxu0 %v1063
        %1065 = vmatprep.subr.mxu0 0.0
        %1066 = vmatpush2.msra.mxu0 0.0
        %1067 = vmatprep.subr.mxu0 0.0
        %1068 = vmatpush2.msra.mxu0 0.0
        %1069 = vmatprep.subr.mxu0 0.0
        %1070 = vmatpush2.msra.mxu0 0.0
        %1071 = vmatprep.subr.mxu0 0.0
        %1072 = vmatpush2.msra.mxu0 0.0
        %1073 = vmatprep.subr.mxu0 0.0
        %1074 = vmatpush2.msra.mxu0 0.0
        %1075 = vmatprep.subr.mxu0 0.0
        %1076 = vmatpush2.msra.mxu0 0.0
        %1077 = vmatprep.subr.mxu0 0.0
        %1078 = vmatpush2.msra.mxu0 0.0
        %1079 = vmatprep.subr.mxu0 0.0
        %1080 = vmatpush2.msra.mxu0 0.0
        %1081 = vmatprep.subr.mxu0 0.0
        %1082 = vmatpush2.msra.mxu0 0.0
        %1083 = vmatprep.subr.mxu0 0.0
        %1084 = vmatpush2.msra.mxu0 0.0
        %1085 = vmatprep.subr.mxu0 0.0
        %1086 = vmatpush2.msra.mxu0 0.0
        %1087 = vmatprep.subr.mxu0 0.0
        %1088 = vmatpush2.msra.mxu0 0.0
        %1089 = vmatprep.subr.mxu0 0.0
        %1090 = vmatpush2.msra.mxu0 0.0
        %1091 = vmatprep.subr.mxu0 0.0
        %1092 = vmatpush2.msra.mxu0 0.0
        %1093 = vmatprep.subr.mxu0 0.0
        %1094 = vmatpush2.msra.mxu0 0.0
        %1095 = vmatprep.subr.mxu0 0.0
        %1096 = vmatpush2.msra.mxu0 0.0
        %1097 = vmatprep.mubr.f32.mxu0 0.0
        %v1098 = vand.u32 %v812, 4294901760
        %v1099 = vsub.f32 %v812, %v1098
        %1100 = vmatmul.mubr.f32.gmra.mxu0 %v1099
        %v1101 = vpop.f32.mrf.mxu0
        %v1102 = vadd.f32 %v1008, %v1101
        %v1103 = vpop.f32.mrf.mxu0
        %1104 = vmatprep.mubr.f32.mxu0 0.0
        %v1105 = vand.u32 %v815, 4294901760
        %v1106 = vsub.f32 %v815, %v1105
        %1107 = vmatmul.mubr.f32.gmra.mxu0 %v1106
        %v1108 = vpop.f32.mrf.mxu0
        %v1109 = vadd.f32 %v1014, %v1108
        %v1110 = vpop.f32.mrf.mxu0
        %1111 = vmatprep.mubr.f32.mxu0 0.0
        %v1112 = vand.u32 %v818, 4294901760
        %v1113 = vsub.f32 %v818, %v1112
        %1114 = vmatmul.mubr.f32.gmra.mxu0 %v1113
        %v1115 = vpop.f32.mrf.mxu0
        %v1116 = vadd.f32 %v1020, %v1115
        %v1117 = vpop.f32.mrf.mxu0
        %1118 = vmatprep.mubr.f32.mxu0 0.0
        %v1119 = vand.u32 %v821, 4294901760
        %v1120 = vsub.f32 %v821, %v1119
        %1121 = vmatmul.mubr.f32.gmra.mxu0 %v1120
        %v1122 = vpop.f32.mrf.mxu0
        %v1123 = vadd.f32 %v1026, %v1122
        %v1124 = vpop.f32.mrf.mxu0
        %1125 = vdwg.mxu0
        %1126 = vmatprep.subr.mxu0 0.0
        %1127 = vmatpush1.msra.mxu0 0.0
        %1128 = vmatprep.subr.mxu0 0.0
        %1129 = vmatpush1.msra.mxu0 0.0
        %1130 = vmatprep.subr.mxu0 0.0
        %1131 = vmatpush1.msra.mxu0 0.0
        %1132 = vmatprep.subr.mxu0 0.0
        %1133 = vmatpush1.msra.mxu0 0.0
        %1134 = vmatprep.subr.mxu0 0.0
        %1135 = vmatpush1.msra.mxu0 0.0
        %1136 = vmatprep.subr.mxu0 0.0
        %1137 = vmatpush1.msra.mxu0 0.0
        %1138 = vmatprep.subr.mxu0 0.0
        %1139 = vmatpush1.msra.mxu0 0.0
        %1140 = vmatprep.subr.mxu0 0.0
        %1141 = vmatpush1.msra.mxu0 0.0
        %1142 = vmatprep.subr.mxu0 0.0
        %1143 = vmatpush1.msra.mxu0 0.0
        %1144 = vmatprep.subr.mxu0 0.0
        %1145 = vmatpush1.msra.mxu0 0.0
        %1146 = vmatprep.subr.mxu0 0.0
        %1147 = vmatpush1.msra.mxu0 0.0
        %1148 = vmatprep.subr.mxu0 0.0
        %1149 = vmatpush1.msra.mxu0 0.0
        %1150 = vmatprep.subr.mxu0 0.0
        %1151 = vmatpush1.msra.mxu0 0.0
        %1152 = vmatprep.subr.mxu0 0.0
        %1153 = vmatpush1.msra.mxu0 0.0
        %1154 = vmatprep.subr.mxu0 0.0
        %v1155 = vand.u32 %v809, 4294901760
        %1156 = vmatpush1.msra.mxu0 %v1155
        %1157 = vmatprep.subr.mxu0 0.0
        %v1158 = vand.u32 %v808, 4294901760
        %1159 = vmatpush1.msra.mxu0 %v1158
        %1160 = vmatprep.subr.mxu0 0.0
        %1161 = vmatpush2.msra.mxu0 0.0
        %1162 = vmatprep.subr.mxu0 0.0
        %1163 = vmatpush2.msra.mxu0 0.0
        %1164 = vmatprep.subr.mxu0 0.0
        %1165 = vmatpush2.msra.mxu0 0.0
        %1166 = vmatprep.subr.mxu0 0.0
        %1167 = vmatpush2.msra.mxu0 0.0
        %1168 = vmatprep.subr.mxu0 0.0
        %1169 = vmatpush2.msra.mxu0 0.0
        %1170 = vmatprep.subr.mxu0 0.0
        %1171 = vmatpush2.msra.mxu0 0.0
        %1172 = vmatprep.subr.mxu0 0.0
        %1173 = vmatpush2.msra.mxu0 0.0
        %1174 = vmatprep.subr.mxu0 0.0
        %1175 = vmatpush2.msra.mxu0 0.0
        %1176 = vmatprep.subr.mxu0 0.0
        %1177 = vmatpush2.msra.mxu0 0.0
        %1178 = vmatprep.subr.mxu0 0.0
        %1179 = vmatpush2.msra.mxu0 0.0
        %1180 = vmatprep.subr.mxu0 0.0
        %1181 = vmatpush2.msra.mxu0 0.0
        %1182 = vmatprep.subr.mxu0 0.0
        %1183 = vmatpush2.msra.mxu0 0.0
        %1184 = vmatprep.subr.mxu0 0.0
        %1185 = vmatpush2.msra.mxu0 0.0
        %1186 = vmatprep.subr.mxu0 0.0
        %1187 = vmatpush2.msra.mxu0 0.0
        %1188 = vmatprep.subr.mxu0 0.0
        %1189 = vmatpush2.msra.mxu0 0.0
        %1190 = vmatprep.subr.mxu0 0.0
        %1191 = vmatpush2.msra.mxu0 0.0
        %1192 = vmatprep.mubr.f32.mxu0 0.0
        %v1193 = vand.u32 %v812, 4294901760
        %v1194 = vsub.f32 %v812, %v1193
        %v1195 = vand.u32 %v1194, 4294901760
        %1196 = vmatmul.mubr.f32.gmra.mxu0 %v1195
        %v1197 = vpop.f32.mrf.mxu0
        %v1198 = vadd.f32 %v1102, %v1197
        %v1199 = vpop.f32.mrf.mxu0
        %1200 = vmatprep.mubr.f32.mxu0 0.0
        %v1201 = vand.u32 %v815, 4294901760
        %v1202 = vsub.f32 %v815, %v1201
        %v1203 = vand.u32 %v1202, 4294901760
        %1204 = vmatmul.mubr.f32.gmra.mxu0 %v1203
        %v1205 = vpop.f32.mrf.mxu0
        %v1206 = vadd.f32 %v1109, %v1205
        %v1207 = vpop.f32.mrf.mxu0
        %1208 = vmatprep.mubr.f32.mxu0 0.0
        %v1209 = vand.u32 %v818, 4294901760
        %v1210 = vsub.f32 %v818, %v1209
        %v1211 = vand.u32 %v1210, 4294901760
        %1212 = vmatmul.mubr.f32.gmra.mxu0 %v1211
        %v1213 = vpop.f32.mrf.mxu0
        %v1214 = vadd.f32 %v1116, %v1213
        %v1215 = vpop.f32.mrf.mxu0
        %1216 = vmatprep.mubr.f32.mxu0 0.0
        %v1217 = vand.u32 %v821, 4294901760
        %v1218 = vsub.f32 %v821, %v1217
        %v1219 = vand.u32 %v1218, 4294901760
        %1220 = vmatmul.mubr.f32.gmra.mxu0 %v1219
        %v1221 = vpop.f32.mrf.mxu0
        %v1222 = vadd.f32 %v1123, %v1221
        %v1223 = vpop.f32.mrf.mxu0
        %1224 = vdwg.mxu0
        %1225 = vmatprep.subr.mxu0 0.0
        %1226 = vmatpush1.msra.mxu0 0.0
        %1227 = vmatprep.subr.mxu0 0.0
        %1228 = vmatpush1.msra.mxu0 0.0
        %1229 = vmatprep.subr.mxu0 0.0
        %1230 = vmatpush1.msra.mxu0 0.0
        %1231 = vmatprep.subr.mxu0 0.0
        %1232 = vmatpush1.msra.mxu0 0.0
        %1233 = vmatprep.subr.mxu0 0.0
        %1234 = vmatpush1.msra.mxu0 0.0
        %1235 = vmatprep.subr.mxu0 0.0
        %1236 = vmatpush1.msra.mxu0 0.0
        %1237 = vmatprep.subr.mxu0 0.0
        %1238 = vmatpush1.msra.mxu0 0.0
        %1239 = vmatprep.subr.mxu0 0.0
        %1240 = vmatpush1.msra.mxu0 0.0
        %1241 = vmatprep.subr.mxu0 0.0
        %1242 = vmatpush1.msra.mxu0 0.0
        %1243 = vmatprep.subr.mxu0 0.0
        %1244 = vmatpush1.msra.mxu0 0.0
        %1245 = vmatprep.subr.mxu0 0.0
        %1246 = vmatpush1.msra.mxu0 0.0
        %1247 = vmatprep.subr.mxu0 0.0
        %1248 = vmatpush1.msra.mxu0 0.0
        %1249 = vmatprep.subr.mxu0 0.0
        %1250 = vmatpush1.msra.mxu0 0.0
        %1251 = vmatprep.subr.mxu0 0.0
        %1252 = vmatpush1.msra.mxu0 0.0
        %1253 = vmatprep.subr.mxu0 0.0
        %v1254 = vand.u32 %v809, 4294901760
        %v1255 = vsub.f32 %v809, %v1254
        %v1256 = vand.u32 %v1255, 4294901760
        %1257 = vmatpush1.msra.mxu0 %v1256
        %1258 = vmatprep.subr.mxu0 0.0
        %v1259 = vand.u32 %v808, 4294901760
        %v1260 = vsub.f32 %v808, %v1259
        %v1261 = vand.u32 %v1260, 4294901760
        %1262 = vmatpush1.msra.mxu0 %v1261
        %1263 = vmatprep.subr.mxu0 0.0
        %1264 = vmatpush2.msra.mxu0 0.0
        %1265 = vmatprep.subr.mxu0 0.0
        %1266 = vmatpush2.msra.mxu0 0.0
        %1267 = vmatprep.subr.mxu0 0.0
        %1268 = vmatpush2.msra.mxu0 0.0
        %1269 = vmatprep.subr.mxu0 0.0
        %1270 = vmatpush2.msra.mxu0 0.0
        %1271 = vmatprep.subr.mxu0 0.0
        %1272 = vmatpush2.msra.mxu0 0.0
        %1273 = vmatprep.subr.mxu0 0.0
        %1274 = vmatpush2.msra.mxu0 0.0
        %1275 = vmatprep.subr.mxu0 0.0
        %1276 = vmatpush2.msra.mxu0 0.0
        %1277 = vmatprep.subr.mxu0 0.0
        %1278 = vmatpush2.msra.mxu0 0.0
        %1279 = vmatprep.subr.mxu0 0.0
        %1280 = vmatpush2.msra.mxu0 0.0
        %1281 = vmatprep.subr.mxu0 0.0
        %1282 = vmatpush2.msra.mxu0 0.0
        %1283 = vmatprep.subr.mxu0 0.0
        %1284 = vmatpush2.msra.mxu0 0.0
        %1285 = vmatprep.subr.mxu0 0.0
        %1286 = vmatpush2.msra.mxu0 0.0
        %1287 = vmatprep.subr.mxu0 0.0
        %1288 = vmatpush2.msra.mxu0 0.0
        %1289 = vmatprep.subr.mxu0 0.0
        %1290 = vmatpush2.msra.mxu0 0.0
        %1291 = vmatprep.subr.mxu0 0.0
        %1292 = vmatpush2.msra.mxu0 0.0
        %1293 = vmatprep.subr.mxu0 0.0
        %1294 = vmatpush2.msra.mxu0 0.0
        %1295 = vmatprep.mubr.f32.mxu0 0.0
        %v1296 = vand.u32 %v812, 4294901760
        %1297 = vmatmul.mubr.f32.gmra.mxu0 %v1296
        %v1298 = vpop.f32.mrf.mxu0
        %v1299 = vadd.f32 %v1198, %v1298
        %v1300 = vpop.f32.mrf.mxu0
        %1301 = vmatprep.mubr.f32.mxu0 0.0
        %v1302 = vand.u32 %v815, 4294901760
        %1303 = vmatmul.mubr.f32.gmra.mxu0 %v1302
        %v1304 = vpop.f32.mrf.mxu0
        %v1305 = vadd.f32 %v1206, %v1304
        %v1306 = vpop.f32.mrf.mxu0
        %1307 = vmatprep.mubr.f32.mxu0 0.0
        %v1308 = vand.u32 %v818, 4294901760
        %1309 = vmatmul.mubr.f32.gmra.mxu0 %v1308
        %v1310 = vpop.f32.mrf.mxu0
        %v1311 = vadd.f32 %v1214, %v1310
        %v1312 = vpop.f32.mrf.mxu0
        %1313 = vmatprep.mubr.f32.mxu0 0.0
        %v1314 = vand.u32 %v821, 4294901760
        %1315 = vmatmul.mubr.f32.gmra.mxu0 %v1314
        %v1316 = vpop.f32.mrf.mxu0
        %v1317 = vadd.f32 %v1222, %v1316
        %v1318 = vpop.f32.mrf.mxu0
        %1319 = vdwg.mxu0
        %1320 = vmatprep.subr.mxu0 0.0
        %1321 = vmatpush1.msra.mxu0 0.0
        %1322 = vmatprep.subr.mxu0 0.0
        %1323 = vmatpush1.msra.mxu0 0.0
        %1324 = vmatprep.subr.mxu0 0.0
        %1325 = vmatpush1.msra.mxu0 0.0
        %1326 = vmatprep.subr.mxu0 0.0
        %1327 = vmatpush1.msra.mxu0 0.0
        %1328 = vmatprep.subr.mxu0 0.0
        %1329 = vmatpush1.msra.mxu0 0.0
        %1330 = vmatprep.subr.mxu0 0.0
        %1331 = vmatpush1.msra.mxu0 0.0
        %1332 = vmatprep.subr.mxu0 0.0
        %1333 = vmatpush1.msra.mxu0 0.0
        %1334 = vmatprep.subr.mxu0 0.0
        %1335 = vmatpush1.msra.mxu0 0.0
        %1336 = vmatprep.subr.mxu0 0.0
        %1337 = vmatpush1.msra.mxu0 0.0
        %1338 = vmatprep.subr.mxu0 0.0
        %1339 = vmatpush1.msra.mxu0 0.0
        %1340 = vmatprep.subr.mxu0 0.0
        %1341 = vmatpush1.msra.mxu0 0.0
        %1342 = vmatprep.subr.mxu0 0.0
        %1343 = vmatpush1.msra.mxu0 0.0
        %1344 = vmatprep.subr.mxu0 0.0
        %1345 = vmatpush1.msra.mxu0 0.0
        %1346 = vmatprep.subr.mxu0 0.0
        %1347 = vmatpush1.msra.mxu0 0.0
        %1348 = vmatprep.subr.mxu0 0.0
        %v1349 = vand.u32 %v809, 4294901760
        %1350 = vmatpush1.msra.mxu0 %v1349
        %1351 = vmatprep.subr.mxu0 0.0
        %v1352 = vand.u32 %v808, 4294901760
        %1353 = vmatpush1.msra.mxu0 %v1352
        %1354 = vmatprep.subr.mxu0 0.0
        %1355 = vmatpush2.msra.mxu0 0.0
        %1356 = vmatprep.subr.mxu0 0.0
        %1357 = vmatpush2.msra.mxu0 0.0
        %1358 = vmatprep.subr.mxu0 0.0
        %1359 = vmatpush2.msra.mxu0 0.0
        %1360 = vmatprep.subr.mxu0 0.0
        %1361 = vmatpush2.msra.mxu0 0.0
        %1362 = vmatprep.subr.mxu0 0.0
        %1363 = vmatpush2.msra.mxu0 0.0
        %1364 = vmatprep.subr.mxu0 0.0
        %1365 = vmatpush2.msra.mxu0 0.0
        %1366 = vmatprep.subr.mxu0 0.0
        %1367 = vmatpush2.msra.mxu0 0.0
        %1368 = vmatprep.subr.mxu0 0.0
        %1369 = vmatpush2.msra.mxu0 0.0
        %1370 = vmatprep.subr.mxu0 0.0
        %1371 = vmatpush2.msra.mxu0 0.0
        %1372 = vmatprep.subr.mxu0 0.0
        %1373 = vmatpush2.msra.mxu0 0.0
        %1374 = vmatprep.subr.mxu0 0.0
        %1375 = vmatpush2.msra.mxu0 0.0
        %1376 = vmatprep.subr.mxu0 0.0
        %1377 = vmatpush2.msra.mxu0 0.0
        %1378 = vmatprep.subr.mxu0 0.0
        %1379 = vmatpush2.msra.mxu0 0.0
        %1380 = vmatprep.subr.mxu0 0.0
        %1381 = vmatpush2.msra.mxu0 0.0
        %1382 = vmatprep.subr.mxu0 0.0
        %1383 = vmatpush2.msra.mxu0 0.0
        %1384 = vmatprep.subr.mxu0 0.0
        %1385 = vmatpush2.msra.mxu0 0.0
        %1386 = vmatprep.mubr.f32.mxu0 0.0
        %v1387 = vand.u32 %v812, 4294901760
        %1388 = vmatmul.mubr.f32.gmra.mxu0 %v1387
        %v1389 = vpop.f32.mrf.mxu0
        %v1390 = vadd.f32 %v1299, %v1389
        %v1391 = vpop.f32.mrf.mxu0
        %1392 = vmatprep.mubr.f32.mxu0 0.0
        %v1393 = vand.u32 %v815, 4294901760
        %1394 = vmatmul.mubr.f32.gmra.mxu0 %v1393
        %v1395 = vpop.f32.mrf.mxu0
        %v1396 = vadd.f32 %v1305, %v1395
        %v1397 = vpop.f32.mrf.mxu0
        %1398 = vmatprep.mubr.f32.mxu0 0.0
        %v1399 = vand.u32 %v818, 4294901760
        %1400 = vmatmul.mubr.f32.gmra.mxu0 %v1399
        %v1401 = vpop.f32.mrf.mxu0
        %v1402 = vadd.f32 %v1311, %v1401
        %v1403 = vpop.f32.mrf.mxu0
        %1404 = vmatprep.mubr.f32.mxu0 0.0
        %v1405 = vand.u32 %v821, 4294901760
        %1406 = vmatmul.mubr.f32.gmra.mxu0 %v1405
        %v1407 = vpop.f32.mrf.mxu0
        %v1408 = vadd.f32 %v1317, %v1407
        %v1409 = vpop.f32.mrf.mxu0
        %1410 = vdwg.mxu0
        %1412 = vset.pattern.permute.xlu0 0
        %1413 = vperm.xlu0 %1412, %v1390
        %v1414 = vpop.permute.xlu0 %1413
        %1417 = vset.pattern.permute.xlu0 0
        %1418 = vperm.xlu0 %1417, %v1396
        %v1419 = vpop.permute.xlu0 %1418
        %1422 = vset.pattern.permute.xlu0 0
        %1423 = vperm.xlu0 %1422, %v1402
        %v1424 = vpop.permute.xlu0 %1423
        %1427 = vset.pattern.permute.xlu0 0
        %1428 = vperm.xlu0 %1427, %v1408
        %v1429 = vpop.permute.xlu0 %1428
        %v1431 = vsub.f32 %v210, %v1414
        %v1432 = vsub.f32 %v211, %v1414
        %v1433 = vsub.f32 %v212, %v1419
        %v1434 = vsub.f32 %v213, %v1419
        %v1435 = vsub.f32 %v214, %v1424
        %v1436 = vsub.f32 %v215, %v1424
        %v1437 = vsub.f32 %v216, %v1429
        %v1438 = vsub.f32 %v217, %v1429
        %v1439 = vmul.f32 %v1431, %v1431
        %v1440 = vmul.f32 %v1432, %v1432
        %v1441 = vmul.f32 %v1433, %v1433
        %v1442 = vmul.f32 %v1434, %v1434
        %v1443 = vmul.f32 %v1435, %v1435
        %v1444 = vmul.f32 %v1436, %v1436
        %v1445 = vmul.f32 %v1437, %v1437
        %v1446 = vmul.f32 %v1438, %v1438
        %v1447 = vadd.f32 %v1439, %v1440
        %1448 = vadd.xlane.f32.xlu0 %v1447
        %v1449 = vpop.xlane.xlu0 %1448
        %v1450 = vadd.f32 %v1441, %v1442
        %1451 = vadd.xlane.f32.xlu0 %v1450
        %v1452 = vpop.xlane.xlu0 %1451
        %v1453 = vadd.f32 %v1443, %v1444
        %1454 = vadd.xlane.f32.xlu0 %v1453
        %v1455 = vpop.xlane.xlu0 %1454
        %v1456 = vadd.f32 %v1445, %v1446
        %1457 = vadd.xlane.f32.xlu0 %v1456
        %v1458 = vpop.xlane.xlu0 %1457
        %1459 = vmatprep.subr.mxu0 0.0
        %1460 = vmatpush1.msra.mxu0 0.0
        %1461 = vmatprep.subr.mxu0 0.0
        %1462 = vmatpush1.msra.mxu0 0.0
        %1463 = vmatprep.subr.mxu0 0.0
        %1464 = vmatpush1.msra.mxu0 0.0
        %1465 = vmatprep.subr.mxu0 0.0
        %1466 = vmatpush1.msra.mxu0 0.0
        %1467 = vmatprep.subr.mxu0 0.0
        %1468 = vmatpush1.msra.mxu0 0.0
        %1469 = vmatprep.subr.mxu0 0.0
        %1470 = vmatpush1.msra.mxu0 0.0
        %1471 = vmatprep.subr.mxu0 0.0
        %1472 = vmatpush1.msra.mxu0 0.0
        %1473 = vmatprep.subr.mxu0 0.0
        %1474 = vmatpush1.msra.mxu0 0.0
        %1475 = vmatprep.subr.mxu0 0.0
        %1476 = vmatpush1.msra.mxu0 0.0
        %1477 = vmatprep.subr.mxu0 0.0
        %1478 = vmatpush1.msra.mxu0 0.0
        %1479 = vmatprep.subr.mxu0 0.0
        %1480 = vmatpush1.msra.mxu0 0.0
        %1481 = vmatprep.subr.mxu0 0.0
        %1482 = vmatpush1.msra.mxu0 0.0
        %1483 = vmatprep.subr.mxu0 0.0
        %v1484 = vand.u32 %v1458, 4294901760
        %1485 = vmatpush1.msra.mxu0 %v1484
        %1486 = vmatprep.subr.mxu0 0.0
        %v1487 = vand.u32 %v1455, 4294901760
        %1488 = vmatpush1.msra.mxu0 %v1487
        %1489 = vmatprep.subr.mxu0 0.0
        %v1490 = vand.u32 %v1452, 4294901760
        %1491 = vmatpush1.msra.mxu0 %v1490
        %1492 = vmatprep.subr.mxu0 0.0
        %v1493 = vand.u32 %v1449, 4294901760
        %1494 = vmatpush1.msra.mxu0 %v1493
        %1495 = vmatprep.subr.mxu0 0.0
        %1496 = vmatpush2.msra.mxu0 0.0
        %1497 = vmatprep.subr.mxu0 0.0
        %1498 = vmatpush2.msra.mxu0 0.0
        %1499 = vmatprep.subr.mxu0 0.0
        %1500 = vmatpush2.msra.mxu0 0.0
        %1501 = vmatprep.subr.mxu0 0.0
        %1502 = vmatpush2.msra.mxu0 0.0
        %1503 = vmatprep.subr.mxu0 0.0
        %1504 = vmatpush2.msra.mxu0 0.0
        %1505 = vmatprep.subr.mxu0 0.0
        %1506 = vmatpush2.msra.mxu0 0.0
        %1507 = vmatprep.subr.mxu0 0.0
        %1508 = vmatpush2.msra.mxu0 0.0
        %1509 = vmatprep.subr.mxu0 0.0
        %1510 = vmatpush2.msra.mxu0 0.0
        %1511 = vmatprep.subr.mxu0 0.0
        %1512 = vmatpush2.msra.mxu0 0.0
        %1513 = vmatprep.subr.mxu0 0.0
        %1514 = vmatpush2.msra.mxu0 0.0
        %1515 = vmatprep.subr.mxu0 0.0
        %1516 = vmatpush2.msra.mxu0 0.0
        %1517 = vmatprep.subr.mxu0 0.0
        %1518 = vmatpush2.msra.mxu0 0.0
        %1519 = vmatprep.subr.mxu0 0.0
        %1520 = vmatpush2.msra.mxu0 0.0
        %1521 = vmatprep.subr.mxu0 0.0
        %1522 = vmatpush2.msra.mxu0 0.0
        %1523 = vmatprep.subr.mxu0 0.0
        %1524 = vmatpush2.msra.mxu0 0.0
        %1525 = vmatprep.subr.mxu0 0.0
        %1526 = vmatpush2.msra.mxu0 0.0
        %1527 = vmatprep.mubr.f32.mxu0 0.0
        %v1528 = vand.u32 %v275, 4294901760
        %v1529 = vsub.f32 %v275, %v1528
        %v1530 = vand.u32 %v1529, 4294901760
        %v1531 = vsub.f32 %v1529, %v1530
        %v1532 = vand.u32 %v1531, 4294901760
        %1533 = vmatmul.mubr.f32.gmra.mxu0 %v1532
        %v1534 = vpop.f32.mrf.mxu0
        %v1535 = vadd.f32 0.0, %v1534
        %v1536 = vpop.f32.mrf.mxu0
        %1537 = vmatprep.mubr.f32.mxu0 0.0
        %v1538 = vand.u32 %v278, 4294901760
        %v1539 = vsub.f32 %v278, %v1538
        %v1540 = vand.u32 %v1539, 4294901760
        %v1541 = vsub.f32 %v1539, %v1540
        %v1542 = vand.u32 %v1541, 4294901760
        %1543 = vmatmul.mubr.f32.gmra.mxu0 %v1542
        %v1544 = vpop.f32.mrf.mxu0
        %v1545 = vadd.f32 0.0, %v1544
        %v1546 = vpop.f32.mrf.mxu0
        %1547 = vdwg.mxu0
        %1548 = vmatprep.subr.mxu0 0.0
        %1549 = vmatpush1.msra.mxu0 0.0
        %1550 = vmatprep.subr.mxu0 0.0
        %1551 = vmatpush1.msra.mxu0 0.0
        %1552 = vmatprep.subr.mxu0 0.0
        %1553 = vmatpush1.msra.mxu0 0.0
        %1554 = vmatprep.subr.mxu0 0.0
        %1555 = vmatpush1.msra.mxu0 0.0
        %1556 = vmatprep.subr.mxu0 0.0
        %1557 = vmatpush1.msra.mxu0 0.0
        %1558 = vmatprep.subr.mxu0 0.0
        %1559 = vmatpush1.msra.mxu0 0.0
        %1560 = vmatprep.subr.mxu0 0.0
        %1561 = vmatpush1.msra.mxu0 0.0
        %1562 = vmatprep.subr.mxu0 0.0
        %1563 = vmatpush1.msra.mxu0 0.0
        %1564 = vmatprep.subr.mxu0 0.0
        %1565 = vmatpush1.msra.mxu0 0.0
        %1566 = vmatprep.subr.mxu0 0.0
        %1567 = vmatpush1.msra.mxu0 0.0
        %1568 = vmatprep.subr.mxu0 0.0
        %1569 = vmatpush1.msra.mxu0 0.0
        %1570 = vmatprep.subr.mxu0 0.0
        %1571 = vmatpush1.msra.mxu0 0.0
        %1572 = vmatprep.subr.mxu0 0.0
        %v1573 = vand.u32 %v1458, 4294901760
        %v1574 = vsub.f32 %v1458, %v1573
        %v1575 = vand.u32 %v1574, 4294901760
        %v1576 = vsub.f32 %v1574, %v1575
        %v1577 = vand.u32 %v1576, 4294901760
        %1578 = vmatpush1.msra.mxu0 %v1577
        %1579 = vmatprep.subr.mxu0 0.0
        %v1580 = vand.u32 %v1455, 4294901760
        %v1581 = vsub.f32 %v1455, %v1580
        %v1582 = vand.u32 %v1581, 4294901760
        %v1583 = vsub.f32 %v1581, %v1582
        %v1584 = vand.u32 %v1583, 4294901760
        %1585 = vmatpush1.msra.mxu0 %v1584
        %1586 = vmatprep.subr.mxu0 0.0
        %v1587 = vand.u32 %v1452, 4294901760
        %v1588 = vsub.f32 %v1452, %v1587
        %v1589 = vand.u32 %v1588, 4294901760
        %v1590 = vsub.f32 %v1588, %v1589
        %v1591 = vand.u32 %v1590, 4294901760
        %1592 = vmatpush1.msra.mxu0 %v1591
        %1593 = vmatprep.subr.mxu0 0.0
        %v1594 = vand.u32 %v1449, 4294901760
        %v1595 = vsub.f32 %v1449, %v1594
        %v1596 = vand.u32 %v1595, 4294901760
        %v1597 = vsub.f32 %v1595, %v1596
        %v1598 = vand.u32 %v1597, 4294901760
        %1599 = vmatpush1.msra.mxu0 %v1598
        %1600 = vmatprep.subr.mxu0 0.0
        %1601 = vmatpush2.msra.mxu0 0.0
        %1602 = vmatprep.subr.mxu0 0.0
        %1603 = vmatpush2.msra.mxu0 0.0
        %1604 = vmatprep.subr.mxu0 0.0
        %1605 = vmatpush2.msra.mxu0 0.0
        %1606 = vmatprep.subr.mxu0 0.0
        %1607 = vmatpush2.msra.mxu0 0.0
        %1608 = vmatprep.subr.mxu0 0.0
        %1609 = vmatpush2.msra.mxu0 0.0
        %1610 = vmatprep.subr.mxu0 0.0
        %1611 = vmatpush2.msra.mxu0 0.0
        %1612 = vmatprep.subr.mxu0 0.0
        %1613 = vmatpush2.msra.mxu0 0.0
        %1614 = vmatprep.subr.mxu0 0.0
        %1615 = vmatpush2.msra.mxu0 0.0
        %1616 = vmatprep.subr.mxu0 0.0
        %1617 = vmatpush2.msra.mxu0 0.0
        %1618 = vmatprep.subr.mxu0 0.0
        %1619 = vmatpush2.msra.mxu0 0.0
        %1620 = vmatprep.subr.mxu0 0.0
        %1621 = vmatpush2.msra.mxu0 0.0
        %1622 = vmatprep.subr.mxu0 0.0
        %1623 = vmatpush2.msra.mxu0 0.0
        %1624 = vmatprep.subr.mxu0 0.0
        %1625 = vmatpush2.msra.mxu0 0.0
        %1626 = vmatprep.subr.mxu0 0.0
        %1627 = vmatpush2.msra.mxu0 0.0
        %1628 = vmatprep.subr.mxu0 0.0
        %1629 = vmatpush2.msra.mxu0 0.0
        %1630 = vmatprep.subr.mxu0 0.0
        %1631 = vmatpush2.msra.mxu0 0.0
        %1632 = vmatprep.mubr.f32.mxu0 0.0
        %v1633 = vand.u32 %v275, 4294901760
        %1634 = vmatmul.mubr.f32.gmra.mxu0 %v1633
        %v1635 = vpop.f32.mrf.mxu0
        %v1636 = vadd.f32 %v1535, %v1635
        %v1637 = vpop.f32.mrf.mxu0
        %1638 = vmatprep.mubr.f32.mxu0 0.0
        %v1639 = vand.u32 %v278, 4294901760
        %1640 = vmatmul.mubr.f32.gmra.mxu0 %v1639
        %v1641 = vpop.f32.mrf.mxu0
        %v1642 = vadd.f32 %v1545, %v1641
        %v1643 = vpop.f32.mrf.mxu0
        %1644 = vdwg.mxu0
        %1645 = vmatprep.subr.mxu0 0.0
        %1646 = vmatpush1.msra.mxu0 0.0
        %1647 = vmatprep.subr.mxu0 0.0
        %1648 = vmatpush1.msra.mxu0 0.0
        %1649 = vmatprep.subr.mxu0 0.0
        %1650 = vmatpush1.msra.mxu0 0.0
        %1651 = vmatprep.subr.mxu0 0.0
        %1652 = vmatpush1.msra.mxu0 0.0
        %1653 = vmatprep.subr.mxu0 0.0
        %1654 = vmatpush1.msra.mxu0 0.0
        %1655 = vmatprep.subr.mxu0 0.0
        %1656 = vmatpush1.msra.mxu0 0.0
        %1657 = vmatprep.subr.mxu0 0.0
        %1658 = vmatpush1.msra.mxu0 0.0
        %1659 = vmatprep.subr.mxu0 0.0
        %1660 = vmatpush1.msra.mxu0 0.0
        %1661 = vmatprep.subr.mxu0 0.0
        %1662 = vmatpush1.msra.mxu0 0.0
        %1663 = vmatprep.subr.mxu0 0.0
        %1664 = vmatpush1.msra.mxu0 0.0
        %1665 = vmatprep.subr.mxu0 0.0
        %1666 = vmatpush1.msra.mxu0 0.0
        %1667 = vmatprep.subr.mxu0 0.0
        %1668 = vmatpush1.msra.mxu0 0.0
        %1669 = vmatprep.subr.mxu0 0.0
        %v1670 = vand.u32 %v1458, 4294901760
        %v1671 = vsub.f32 %v1458, %v1670
        %1672 = vmatpush1.msra.mxu0 %v1671
        %1673 = vmatprep.subr.mxu0 0.0
        %v1674 = vand.u32 %v1455, 4294901760
        %v1675 = vsub.f32 %v1455, %v1674
        %1676 = vmatpush1.msra.mxu0 %v1675
        %1677 = vmatprep.subr.mxu0 0.0
        %v1678 = vand.u32 %v1452, 4294901760
        %v1679 = vsub.f32 %v1452, %v1678
        %1680 = vmatpush1.msra.mxu0 %v1679
        %1681 = vmatprep.subr.mxu0 0.0
        %v1682 = vand.u32 %v1449, 4294901760
        %v1683 = vsub.f32 %v1449, %v1682
        %1684 = vmatpush1.msra.mxu0 %v1683
        %1685 = vmatprep.subr.mxu0 0.0
        %1686 = vmatpush2.msra.mxu0 0.0
        %1687 = vmatprep.subr.mxu0 0.0
        %1688 = vmatpush2.msra.mxu0 0.0
        %1689 = vmatprep.subr.mxu0 0.0
        %1690 = vmatpush2.msra.mxu0 0.0
        %1691 = vmatprep.subr.mxu0 0.0
        %1692 = vmatpush2.msra.mxu0 0.0
        %1693 = vmatprep.subr.mxu0 0.0
        %1694 = vmatpush2.msra.mxu0 0.0
        %1695 = vmatprep.subr.mxu0 0.0
        %1696 = vmatpush2.msra.mxu0 0.0
        %1697 = vmatprep.subr.mxu0 0.0
        %1698 = vmatpush2.msra.mxu0 0.0
        %1699 = vmatprep.subr.mxu0 0.0
        %1700 = vmatpush2.msra.mxu0 0.0
        %1701 = vmatprep.subr.mxu0 0.0
        %1702 = vmatpush2.msra.mxu0 0.0
        %1703 = vmatprep.subr.mxu0 0.0
        %1704 = vmatpush2.msra.mxu0 0.0
        %1705 = vmatprep.subr.mxu0 0.0
        %1706 = vmatpush2.msra.mxu0 0.0
        %1707 = vmatprep.subr.mxu0 0.0
        %1708 = vmatpush2.msra.mxu0 0.0
        %1709 = vmatprep.subr.mxu0 0.0
        %1710 = vmatpush2.msra.mxu0 0.0
        %1711 = vmatprep.subr.mxu0 0.0
        %1712 = vmatpush2.msra.mxu0 0.0
        %1713 = vmatprep.subr.mxu0 0.0
        %1714 = vmatpush2.msra.mxu0 0.0
        %1715 = vmatprep.subr.mxu0 0.0
        %1716 = vmatpush2.msra.mxu0 0.0
        %1717 = vmatprep.mubr.f32.mxu0 0.0
        %v1718 = vand.u32 %v275, 4294901760
        %v1719 = vsub.f32 %v275, %v1718
        %1720 = vmatmul.mubr.f32.gmra.mxu0 %v1719
        %v1721 = vpop.f32.mrf.mxu0
        %v1722 = vadd.f32 %v1636, %v1721
        %v1723 = vpop.f32.mrf.mxu0
        %1724 = vmatprep.mubr.f32.mxu0 0.0
        %v1725 = vand.u32 %v278, 4294901760
        %v1726 = vsub.f32 %v278, %v1725
        %1727 = vmatmul.mubr.f32.gmra.mxu0 %v1726
        %v1728 = vpop.f32.mrf.mxu0
        %v1729 = vadd.f32 %v1642, %v1728
        %v1730 = vpop.f32.mrf.mxu0
        %1731 = vdwg.mxu0
        %1732 = vmatprep.subr.mxu0 0.0
        %1733 = vmatpush1.msra.mxu0 0.0
        %1734 = vmatprep.subr.mxu0 0.0
        %1735 = vmatpush1.msra.mxu0 0.0
        %1736 = vmatprep.subr.mxu0 0.0
        %1737 = vmatpush1.msra.mxu0 0.0
        %1738 = vmatprep.subr.mxu0 0.0
        %1739 = vmatpush1.msra.mxu0 0.0
        %1740 = vmatprep.subr.mxu0 0.0
        %1741 = vmatpush1.msra.mxu0 0.0
        %1742 = vmatprep.subr.mxu0 0.0
        %1743 = vmatpush1.msra.mxu0 0.0
        %1744 = vmatprep.subr.mxu0 0.0
        %1745 = vmatpush1.msra.mxu0 0.0
        %1746 = vmatprep.subr.mxu0 0.0
        %1747 = vmatpush1.msra.mxu0 0.0
        %1748 = vmatprep.subr.mxu0 0.0
        %1749 = vmatpush1.msra.mxu0 0.0
        %1750 = vmatprep.subr.mxu0 0.0
        %1751 = vmatpush1.msra.mxu0 0.0
        %1752 = vmatprep.subr.mxu0 0.0
        %1753 = vmatpush1.msra.mxu0 0.0
        %1754 = vmatprep.subr.mxu0 0.0
        %1755 = vmatpush1.msra.mxu0 0.0
        %1756 = vmatprep.subr.mxu0 0.0
        %v1757 = vand.u32 %v1458, 4294901760
        %1758 = vmatpush1.msra.mxu0 %v1757
        %1759 = vmatprep.subr.mxu0 0.0
        %v1760 = vand.u32 %v1455, 4294901760
        %1761 = vmatpush1.msra.mxu0 %v1760
        %1762 = vmatprep.subr.mxu0 0.0
        %v1763 = vand.u32 %v1452, 4294901760
        %1764 = vmatpush1.msra.mxu0 %v1763
        %1765 = vmatprep.subr.mxu0 0.0
        %v1766 = vand.u32 %v1449, 4294901760
        %1767 = vmatpush1.msra.mxu0 %v1766
        %1768 = vmatprep.subr.mxu0 0.0
        %1769 = vmatpush2.msra.mxu0 0.0
        %1770 = vmatprep.subr.mxu0 0.0
        %1771 = vmatpush2.msra.mxu0 0.0
        %1772 = vmatprep.subr.mxu0 0.0
        %1773 = vmatpush2.msra.mxu0 0.0
        %1774 = vmatprep.subr.mxu0 0.0
        %1775 = vmatpush2.msra.mxu0 0.0
        %1776 = vmatprep.subr.mxu0 0.0
        %1777 = vmatpush2.msra.mxu0 0.0
        %1778 = vmatprep.subr.mxu0 0.0
        %1779 = vmatpush2.msra.mxu0 0.0
        %1780 = vmatprep.subr.mxu0 0.0
        %1781 = vmatpush2.msra.mxu0 0.0
        %1782 = vmatprep.subr.mxu0 0.0
        %1783 = vmatpush2.msra.mxu0 0.0
        %1784 = vmatprep.subr.mxu0 0.0
        %1785 = vmatpush2.msra.mxu0 0.0
        %1786 = vmatprep.subr.mxu0 0.0
        %1787 = vmatpush2.msra.mxu0 0.0
        %1788 = vmatprep.subr.mxu0 0.0
        %1789 = vmatpush2.msra.mxu0 0.0
        %1790 = vmatprep.subr.mxu0 0.0
        %1791 = vmatpush2.msra.mxu0 0.0
        %1792 = vmatprep.subr.mxu0 0.0
        %1793 = vmatpush2.msra.mxu0 0.0
        %1794 = vmatprep.subr.mxu0 0.0
        %1795 = vmatpush2.msra.mxu0 0.0
        %1796 = vmatprep.subr.mxu0 0.0
        %1797 = vmatpush2.msra.mxu0 0.0
        %1798 = vmatprep.subr.mxu0 0.0
        %1799 = vmatpush2.msra.mxu0 0.0
        %1800 = vmatprep.mubr.f32.mxu0 0.0
        %v1801 = vand.u32 %v275, 4294901760
        %v1802 = vsub.f32 %v275, %v1801
        %v1803 = vand.u32 %v1802, 4294901760
        %1804 = vmatmul.mubr.f32.gmra.mxu0 %v1803
        %v1805 = vpop.f32.mrf.mxu0
        %v1806 = vadd.f32 %v1722, %v1805
        %v1807 = vpop.f32.mrf.mxu0
        %1808 = vmatprep.mubr.f32.mxu0 0.0
        %v1809 = vand.u32 %v278, 4294901760
        %v1810 = vsub.f32 %v278, %v1809
        %v1811 = vand.u32 %v1810, 4294901760
        %1812 = vmatmul.mubr.f32.gmra.mxu0 %v1811
        %v1813 = vpop.f32.mrf.mxu0
        %v1814 = vadd.f32 %v1729, %v1813
        %v1815 = vpop.f32.mrf.mxu0
        %1816 = vdwg.mxu0
        %1817 = vmatprep.subr.mxu0 0.0
        %1818 = vmatpush1.msra.mxu0 0.0
        %1819 = vmatprep.subr.mxu0 0.0
        %1820 = vmatpush1.msra.mxu0 0.0
        %1821 = vmatprep.subr.mxu0 0.0
        %1822 = vmatpush1.msra.mxu0 0.0
        %1823 = vmatprep.subr.mxu0 0.0
        %1824 = vmatpush1.msra.mxu0 0.0
        %1825 = vmatprep.subr.mxu0 0.0
        %1826 = vmatpush1.msra.mxu0 0.0
        %1827 = vmatprep.subr.mxu0 0.0
        %1828 = vmatpush1.msra.mxu0 0.0
        %1829 = vmatprep.subr.mxu0 0.0
        %1830 = vmatpush1.msra.mxu0 0.0
        %1831 = vmatprep.subr.mxu0 0.0
        %1832 = vmatpush1.msra.mxu0 0.0
        %1833 = vmatprep.subr.mxu0 0.0
        %1834 = vmatpush1.msra.mxu0 0.0
        %1835 = vmatprep.subr.mxu0 0.0
        %1836 = vmatpush1.msra.mxu0 0.0
        %1837 = vmatprep.subr.mxu0 0.0
        %1838 = vmatpush1.msra.mxu0 0.0
        %1839 = vmatprep.subr.mxu0 0.0
        %1840 = vmatpush1.msra.mxu0 0.0
        %1841 = vmatprep.subr.mxu0 0.0
        %v1842 = vand.u32 %v1458, 4294901760
        %v1843 = vsub.f32 %v1458, %v1842
        %v1844 = vand.u32 %v1843, 4294901760
        %1845 = vmatpush1.msra.mxu0 %v1844
        %1846 = vmatprep.subr.mxu0 0.0
        %v1847 = vand.u32 %v1455, 4294901760
        %v1848 = vsub.f32 %v1455, %v1847
        %v1849 = vand.u32 %v1848, 4294901760
        %1850 = vmatpush1.msra.mxu0 %v1849
        %1851 = vmatprep.subr.mxu0 0.0
        %v1852 = vand.u32 %v1452, 4294901760
        %v1853 = vsub.f32 %v1452, %v1852
        %v1854 = vand.u32 %v1853, 4294901760
        %1855 = vmatpush1.msra.mxu0 %v1854
        %1856 = vmatprep.subr.mxu0 0.0
        %v1857 = vand.u32 %v1449, 4294901760
        %v1858 = vsub.f32 %v1449, %v1857
        %v1859 = vand.u32 %v1858, 4294901760
        %1860 = vmatpush1.msra.mxu0 %v1859
        %1861 = vmatprep.subr.mxu0 0.0
        %1862 = vmatpush2.msra.mxu0 0.0
        %1863 = vmatprep.subr.mxu0 0.0
        %1864 = vmatpush2.msra.mxu0 0.0
        %1865 = vmatprep.subr.mxu0 0.0
        %1866 = vmatpush2.msra.mxu0 0.0
        %1867 = vmatprep.subr.mxu0 0.0
        %1868 = vmatpush2.msra.mxu0 0.0
        %1869 = vmatprep.subr.mxu0 0.0
        %1870 = vmatpush2.msra.mxu0 0.0
        %1871 = vmatprep.subr.mxu0 0.0
        %1872 = vmatpush2.msra.mxu0 0.0
        %1873 = vmatprep.subr.mxu0 0.0
        %1874 = vmatpush2.msra.mxu0 0.0
        %1875 = vmatprep.subr.mxu0 0.0
        %1876 = vmatpush2.msra.mxu0 0.0
        %1877 = vmatprep.subr.mxu0 0.0
        %1878 = vmatpush2.msra.mxu0 0.0
        %1879 = vmatprep.subr.mxu0 0.0
        %1880 = vmatpush2.msra.mxu0 0.0
        %1881 = vmatprep.subr.mxu0 0.0
        %1882 = vmatpush2.msra.mxu0 0.0
        %1883 = vmatprep.subr.mxu0 0.0
        %1884 = vmatpush2.msra.mxu0 0.0
        %1885 = vmatprep.subr.mxu0 0.0
        %1886 = vmatpush2.msra.mxu0 0.0
        %1887 = vmatprep.subr.mxu0 0.0
        %1888 = vmatpush2.msra.mxu0 0.0
        %1889 = vmatprep.subr.mxu0 0.0
        %1890 = vmatpush2.msra.mxu0 0.0
        %1891 = vmatprep.subr.mxu0 0.0
        %1892 = vmatpush2.msra.mxu0 0.0
        %1893 = vmatprep.mubr.f32.mxu0 0.0
        %v1894 = vand.u32 %v275, 4294901760
        %1895 = vmatmul.mubr.f32.gmra.mxu0 %v1894
        %v1896 = vpop.f32.mrf.mxu0
        %v1897 = vadd.f32 %v1806, %v1896
        %v1898 = vpop.f32.mrf.mxu0
        %1899 = vmatprep.mubr.f32.mxu0 0.0
        %v1900 = vand.u32 %v278, 4294901760
        %1901 = vmatmul.mubr.f32.gmra.mxu0 %v1900
        %v1902 = vpop.f32.mrf.mxu0
        %v1903 = vadd.f32 %v1814, %v1902
        %v1904 = vpop.f32.mrf.mxu0
        %1905 = vdwg.mxu0
        %1906 = vmatprep.subr.mxu0 0.0
        %1907 = vmatpush1.msra.mxu0 0.0
        %1908 = vmatprep.subr.mxu0 0.0
        %1909 = vmatpush1.msra.mxu0 0.0
        %1910 = vmatprep.subr.mxu0 0.0
        %1911 = vmatpush1.msra.mxu0 0.0
        %1912 = vmatprep.subr.mxu0 0.0
        %1913 = vmatpush1.msra.mxu0 0.0
        %1914 = vmatprep.subr.mxu0 0.0
        %1915 = vmatpush1.msra.mxu0 0.0
        %1916 = vmatprep.subr.mxu0 0.0
        %1917 = vmatpush1.msra.mxu0 0.0
        %1918 = vmatprep.subr.mxu0 0.0
        %1919 = vmatpush1.msra.mxu0 0.0
        %1920 = vmatprep.subr.mxu0 0.0
        %1921 = vmatpush1.msra.mxu0 0.0
        %1922 = vmatprep.subr.mxu0 0.0
        %1923 = vmatpush1.msra.mxu0 0.0
        %1924 = vmatprep.subr.mxu0 0.0
        %1925 = vmatpush1.msra.mxu0 0.0
        %1926 = vmatprep.subr.mxu0 0.0
        %1927 = vmatpush1.msra.mxu0 0.0
        %1928 = vmatprep.subr.mxu0 0.0
        %1929 = vmatpush1.msra.mxu0 0.0
        %1930 = vmatprep.subr.mxu0 0.0
        %v1931 = vand.u32 %v1458, 4294901760
        %1932 = vmatpush1.msra.mxu0 %v1931
        %1933 = vmatprep.subr.mxu0 0.0
        %v1934 = vand.u32 %v1455, 4294901760
        %1935 = vmatpush1.msra.mxu0 %v1934
        %1936 = vmatprep.subr.mxu0 0.0
        %v1937 = vand.u32 %v1452, 4294901760
        %1938 = vmatpush1.msra.mxu0 %v1937
        %1939 = vmatprep.subr.mxu0 0.0
        %v1940 = vand.u32 %v1449, 4294901760
        %1941 = vmatpush1.msra.mxu0 %v1940
        %1942 = vmatprep.subr.mxu0 0.0
        %1943 = vmatpush2.msra.mxu0 0.0
        %1944 = vmatprep.subr.mxu0 0.0
        %1945 = vmatpush2.msra.mxu0 0.0
        %1946 = vmatprep.subr.mxu0 0.0
        %1947 = vmatpush2.msra.mxu0 0.0
        %1948 = vmatprep.subr.mxu0 0.0
        %1949 = vmatpush2.msra.mxu0 0.0
        %1950 = vmatprep.subr.mxu0 0.0
        %1951 = vmatpush2.msra.mxu0 0.0
        %1952 = vmatprep.subr.mxu0 0.0
        %1953 = vmatpush2.msra.mxu0 0.0
        %1954 = vmatprep.subr.mxu0 0.0
        %1955 = vmatpush2.msra.mxu0 0.0
        %1956 = vmatprep.subr.mxu0 0.0
        %1957 = vmatpush2.msra.mxu0 0.0
        %1958 = vmatprep.subr.mxu0 0.0
        %1959 = vmatpush2.msra.mxu0 0.0
        %1960 = vmatprep.subr.mxu0 0.0
        %1961 = vmatpush2.msra.mxu0 0.0
        %1962 = vmatprep.subr.mxu0 0.0
        %1963 = vmatpush2.msra.mxu0 0.0
        %1964 = vmatprep.subr.mxu0 0.0
        %1965 = vmatpush2.msra.mxu0 0.0
        %1966 = vmatprep.subr.mxu0 0.0
        %1967 = vmatpush2.msra.mxu0 0.0
        %1968 = vmatprep.subr.mxu0 0.0
        %1969 = vmatpush2.msra.mxu0 0.0
        %1970 = vmatprep.subr.mxu0 0.0
        %1971 = vmatpush2.msra.mxu0 0.0
        %1972 = vmatprep.subr.mxu0 0.0
        %1973 = vmatpush2.msra.mxu0 0.0
        %1974 = vmatprep.mubr.f32.mxu0 0.0
        %v1975 = vand.u32 %v275, 4294901760
        %1976 = vmatmul.mubr.f32.gmra.mxu0 %v1975
        %v1977 = vpop.f32.mrf.mxu0
        %v1978 = vadd.f32 %v1897, %v1977
        %v1979 = vpop.f32.mrf.mxu0
        %1980 = vmatprep.mubr.f32.mxu0 0.0
        %v1981 = vand.u32 %v278, 4294901760
        %1982 = vmatmul.mubr.f32.gmra.mxu0 %v1981
        %v1983 = vpop.f32.mrf.mxu0
        %v1984 = vadd.f32 %v1903, %v1983
        %v1985 = vpop.f32.mrf.mxu0
        %1986 = vdwg.mxu0
        %v1987 = vmul.f32 %v1978, 0.0019569471
        %v1988 = vmul.f32 %v1984, 0.0019569471
        %v1989 = vrsqrt.pop %v1987
        %v1990 = vmul.f32 %v1987, %v1989
        %vm1991 = vcmp.eq.f32.partialorder %v1987, inf
        %v1992 = vsel %vm1991, %v1987, %v1990
        %vm1993 = vcmp.eq.f32.partialorder %v1987, 0.0
        %v1994 = vand.u32 %v1987, 2147483648
        %v1995 = vsel %vm1993, %v1994, %v1992
        %v1996 = vrsqrt.pop %v1988
        %v1997 = vmul.f32 %v1988, %v1996
        %vm1998 = vcmp.eq.f32.partialorder %v1988, inf
        %v1999 = vsel %vm1998, %v1988, %v1997
        %vm2000 = vcmp.eq.f32.partialorder %v1988, 0.0
        %v2001 = vand.u32 %v1988, 2147483648
        %v2002 = vsel %vm2000, %v2001, %v1999
        %v2003 = vadd.f32 %v1995, 1e-10
        %v2004 = vadd.f32 %v2002, 1e-10
        %v2005 = vrcp.pop %v2003
        %v2006 = vmul.f32 1.0, %v2005
        %v2007 = vrcp.pop %v2004
        %v2008 = vmul.f32 1.0, %v2007
        %2009 = vmatprep.subr.mxu0 0.0
        %2010 = vmatpush1.msra.mxu0 0.0
        %2011 = vmatprep.subr.mxu0 0.0
        %2012 = vmatpush1.msra.mxu0 0.0
        %2013 = vmatprep.subr.mxu0 0.0
        %2014 = vmatpush1.msra.mxu0 0.0
        %2015 = vmatprep.subr.mxu0 0.0
        %2016 = vmatpush1.msra.mxu0 0.0
        %2017 = vmatprep.subr.mxu0 0.0
        %2018 = vmatpush1.msra.mxu0 0.0
        %2019 = vmatprep.subr.mxu0 0.0
        %2020 = vmatpush1.msra.mxu0 0.0
        %2021 = vmatprep.subr.mxu0 0.0
        %2022 = vmatpush1.msra.mxu0 0.0
        %2023 = vmatprep.subr.mxu0 0.0
        %2024 = vmatpush1.msra.mxu0 0.0
        %2025 = vmatprep.subr.mxu0 0.0
        %2026 = vmatpush1.msra.mxu0 0.0
        %2027 = vmatprep.subr.mxu0 0.0
        %2028 = vmatpush1.msra.mxu0 0.0
        %2029 = vmatprep.subr.mxu0 0.0
        %2030 = vmatpush1.msra.mxu0 0.0
        %2031 = vmatprep.subr.mxu0 0.0
        %2032 = vmatpush1.msra.mxu0 0.0
        %2033 = vmatprep.subr.mxu0 0.0
        %2034 = vmatpush1.msra.mxu0 0.0
        %2035 = vmatprep.subr.mxu0 0.0
        %2036 = vmatpush1.msra.mxu0 0.0
        %2037 = vmatprep.subr.mxu0 0.0
        %v2038 = vand.u32 %v2008, 4294901760
        %2039 = vmatpush1.msra.mxu0 %v2038
        %2040 = vmatprep.subr.mxu0 0.0
        %v2041 = vand.u32 %v2006, 4294901760
        %2042 = vmatpush1.msra.mxu0 %v2041
        %2043 = vmatprep.subr.mxu0 0.0
        %2044 = vmatpush2.msra.mxu0 0.0
        %2045 = vmatprep.subr.mxu0 0.0
        %2046 = vmatpush2.msra.mxu0 0.0
        %2047 = vmatprep.subr.mxu0 0.0
        %2048 = vmatpush2.msra.mxu0 0.0
        %2049 = vmatprep.subr.mxu0 0.0
        %2050 = vmatpush2.msra.mxu0 0.0
        %2051 = vmatprep.subr.mxu0 0.0
        %2052 = vmatpush2.msra.mxu0 0.0
        %2053 = vmatprep.subr.mxu0 0.0
        %2054 = vmatpush2.msra.mxu0 0.0
        %2055 = vmatprep.subr.mxu0 0.0
        %2056 = vmatpush2.msra.mxu0 0.0
        %2057 = vmatprep.subr.mxu0 0.0
        %2058 = vmatpush2.msra.mxu0 0.0
        %2059 = vmatprep.subr.mxu0 0.0
        %2060 = vmatpush2.msra.mxu0 0.0
        %2061 = vmatprep.subr.mxu0 0.0
        %2062 = vmatpush2.msra.mxu0 0.0
        %2063 = vmatprep.subr.mxu0 0.0
        %2064 = vmatpush2.msra.mxu0 0.0
        %2065 = vmatprep.subr.mxu0 0.0
        %2066 = vmatpush2.msra.mxu0 0.0
        %2067 = vmatprep.subr.mxu0 0.0
        %2068 = vmatpush2.msra.mxu0 0.0
        %2069 = vmatprep.subr.mxu0 0.0
        %2070 = vmatpush2.msra.mxu0 0.0
        %2071 = vmatprep.subr.mxu0 0.0
        %2072 = vmatpush2.msra.mxu0 0.0
        %2073 = vmatprep.subr.mxu0 0.0
        %2074 = vmatpush2.msra.mxu0 0.0
        %2075 = vmatprep.mubr.f32.mxu0 0.0
        %v2076 = vand.u32 %v812, 4294901760
        %v2077 = vsub.f32 %v812, %v2076
        %v2078 = vand.u32 %v2077, 4294901760
        %v2079 = vsub.f32 %v2077, %v2078
        %v2080 = vand.u32 %v2079, 4294901760
        %2081 = vmatmul.mubr.f32.gmra.mxu0 %v2080
        %v2082 = vpop.f32.mrf.mxu0
        %v2083 = vadd.f32 0.0, %v2082
        %v2084 = vpop.f32.mrf.mxu0
        %2085 = vmatprep.mubr.f32.mxu0 0.0
        %v2086 = vand.u32 %v815, 4294901760
        %v2087 = vsub.f32 %v815, %v2086
        %v2088 = vand.u32 %v2087, 4294901760
        %v2089 = vsub.f32 %v2087, %v2088
        %v2090 = vand.u32 %v2089, 4294901760
        %2091 = vmatmul.mubr.f32.gmra.mxu0 %v2090
        %v2092 = vpop.f32.mrf.mxu0
        %v2093 = vadd.f32 0.0, %v2092
        %v2094 = vpop.f32.mrf.mxu0
        %2095 = vmatprep.mubr.f32.mxu0 0.0
        %v2096 = vand.u32 %v818, 4294901760
        %v2097 = vsub.f32 %v818, %v2096
        %v2098 = vand.u32 %v2097, 4294901760
        %v2099 = vsub.f32 %v2097, %v2098
        %v2100 = vand.u32 %v2099, 4294901760
        %2101 = vmatmul.mubr.f32.gmra.mxu0 %v2100
        %v2102 = vpop.f32.mrf.mxu0
        %v2103 = vadd.f32 0.0, %v2102
        %v2104 = vpop.f32.mrf.mxu0
        %2105 = vmatprep.mubr.f32.mxu0 0.0
        %v2106 = vand.u32 %v821, 4294901760
        %v2107 = vsub.f32 %v821, %v2106
        %v2108 = vand.u32 %v2107, 4294901760
        %v2109 = vsub.f32 %v2107, %v2108
        %v2110 = vand.u32 %v2109, 4294901760
        %2111 = vmatmul.mubr.f32.gmra.mxu0 %v2110
        %v2112 = vpop.f32.mrf.mxu0
        %v2113 = vadd.f32 0.0, %v2112
        %v2114 = vpop.f32.mrf.mxu0
        %2115 = vdwg.mxu0
        %2116 = vmatprep.subr.mxu0 0.0
        %2117 = vmatpush1.msra.mxu0 0.0
        %2118 = vmatprep.subr.mxu0 0.0
        %2119 = vmatpush1.msra.mxu0 0.0
        %2120 = vmatprep.subr.mxu0 0.0
        %2121 = vmatpush1.msra.mxu0 0.0
        %2122 = vmatprep.subr.mxu0 0.0
        %2123 = vmatpush1.msra.mxu0 0.0
        %2124 = vmatprep.subr.mxu0 0.0
        %2125 = vmatpush1.msra.mxu0 0.0
        %2126 = vmatprep.subr.mxu0 0.0
        %2127 = vmatpush1.msra.mxu0 0.0
        %2128 = vmatprep.subr.mxu0 0.0
        %2129 = vmatpush1.msra.mxu0 0.0
        %2130 = vmatprep.subr.mxu0 0.0
        %2131 = vmatpush1.msra.mxu0 0.0
        %2132 = vmatprep.subr.mxu0 0.0
        %2133 = vmatpush1.msra.mxu0 0.0
        %2134 = vmatprep.subr.mxu0 0.0
        %2135 = vmatpush1.msra.mxu0 0.0
        %2136 = vmatprep.subr.mxu0 0.0
        %2137 = vmatpush1.msra.mxu0 0.0
        %2138 = vmatprep.subr.mxu0 0.0
        %2139 = vmatpush1.msra.mxu0 0.0
        %2140 = vmatprep.subr.mxu0 0.0
        %2141 = vmatpush1.msra.mxu0 0.0
        %2142 = vmatprep.subr.mxu0 0.0
        %2143 = vmatpush1.msra.mxu0 0.0
        %2144 = vmatprep.subr.mxu0 0.0
        %v2145 = vand.u32 %v2008, 4294901760
        %v2146 = vsub.f32 %v2008, %v2145
        %v2147 = vand.u32 %v2146, 4294901760
        %v2148 = vsub.f32 %v2146, %v2147
        %v2149 = vand.u32 %v2148, 4294901760
        %2150 = vmatpush1.msra.mxu0 %v2149
        %2151 = vmatprep.subr.mxu0 0.0
        %v2152 = vand.u32 %v2006, 4294901760
        %v2153 = vsub.f32 %v2006, %v2152
        %v2154 = vand.u32 %v2153, 4294901760
        %v2155 = vsub.f32 %v2153, %v2154
        %v2156 = vand.u32 %v2155, 4294901760
        %2157 = vmatpush1.msra.mxu0 %v2156
        %2158 = vmatprep.subr.mxu0 0.0
        %2159 = vmatpush2.msra.mxu0 0.0
        %2160 = vmatprep.subr.mxu0 0.0
        %2161 = vmatpush2.msra.mxu0 0.0
        %2162 = vmatprep.subr.mxu0 0.0
        %2163 = vmatpush2.msra.mxu0 0.0
        %2164 = vmatprep.subr.mxu0 0.0
        %2165 = vmatpush2.msra.mxu0 0.0
        %2166 = vmatprep.subr.mxu0 0.0
        %2167 = vmatpush2.msra.mxu0 0.0
        %2168 = vmatprep.subr.mxu0 0.0
        %2169 = vmatpush2.msra.mxu0 0.0
        %2170 = vmatprep.subr.mxu0 0.0
        %2171 = vmatpush2.msra.mxu0 0.0
        %2172 = vmatprep.subr.mxu0 0.0
        %2173 = vmatpush2.msra.mxu0 0.0
        %2174 = vmatprep.subr.mxu0 0.0
        %2175 = vmatpush2.msra.mxu0 0.0
        %2176 = vmatprep.subr.mxu0 0.0
        %2177 = vmatpush2.msra.mxu0 0.0
        %2178 = vmatprep.subr.mxu0 0.0
        %2179 = vmatpush2.msra.mxu0 0.0
        %2180 = vmatprep.subr.mxu0 0.0
        %2181 = vmatpush2.msra.mxu0 0.0
        %2182 = vmatprep.subr.mxu0 0.0
        %2183 = vmatpush2.msra.mxu0 0.0
        %2184 = vmatprep.subr.mxu0 0.0
        %2185 = vmatpush2.msra.mxu0 0.0
        %2186 = vmatprep.subr.mxu0 0.0
        %2187 = vmatpush2.msra.mxu0 0.0
        %2188 = vmatprep.subr.mxu0 0.0
        %2189 = vmatpush2.msra.mxu0 0.0
        %2190 = vmatprep.mubr.f32.mxu0 0.0
        %v2191 = vand.u32 %v812, 4294901760
        %2192 = vmatmul.mubr.f32.gmra.mxu0 %v2191
        %v2193 = vpop.f32.mrf.mxu0
        %v2194 = vadd.f32 %v2083, %v2193
        %v2195 = vpop.f32.mrf.mxu0
        %2196 = vmatprep.mubr.f32.mxu0 0.0
        %v2197 = vand.u32 %v815, 4294901760
        %2198 = vmatmul.mubr.f32.gmra.mxu0 %v2197
        %v2199 = vpop.f32.mrf.mxu0
        %v2200 = vadd.f32 %v2093, %v2199
        %v2201 = vpop.f32.mrf.mxu0
        %2202 = vmatprep.mubr.f32.mxu0 0.0
        %v2203 = vand.u32 %v818, 4294901760
        %2204 = vmatmul.mubr.f32.gmra.mxu0 %v2203
        %v2205 = vpop.f32.mrf.mxu0
        %v2206 = vadd.f32 %v2103, %v2205
        %v2207 = vpop.f32.mrf.mxu0
        %2208 = vmatprep.mubr.f32.mxu0 0.0
        %v2209 = vand.u32 %v821, 4294901760
        %2210 = vmatmul.mubr.f32.gmra.mxu0 %v2209
        %v2211 = vpop.f32.mrf.mxu0
        %v2212 = vadd.f32 %v2113, %v2211
        %v2213 = vpop.f32.mrf.mxu0
        %2214 = vdwg.mxu0
        %2215 = vmatprep.subr.mxu0 0.0
        %2216 = vmatpush1.msra.mxu0 0.0
        %2217 = vmatprep.subr.mxu0 0.0
        %2218 = vmatpush1.msra.mxu0 0.0
        %2219 = vmatprep.subr.mxu0 0.0
        %2220 = vmatpush1.msra.mxu0 0.0
        %2221 = vmatprep.subr.mxu0 0.0
        %2222 = vmatpush1.msra.mxu0 0.0
        %2223 = vmatprep.subr.mxu0 0.0
        %2224 = vmatpush1.msra.mxu0 0.0
        %2225 = vmatprep.subr.mxu0 0.0
        %2226 = vmatpush1.msra.mxu0 0.0
        %2227 = vmatprep.subr.mxu0 0.0
        %2228 = vmatpush1.msra.mxu0 0.0
        %2229 = vmatprep.subr.mxu0 0.0
        %2230 = vmatpush1.msra.mxu0 0.0
        %2231 = vmatprep.subr.mxu0 0.0
        %2232 = vmatpush1.msra.mxu0 0.0
        %2233 = vmatprep.subr.mxu0 0.0
        %2234 = vmatpush1.msra.mxu0 0.0
        %2235 = vmatprep.subr.mxu0 0.0
        %2236 = vmatpush1.msra.mxu0 0.0
        %2237 = vmatprep.subr.mxu0 0.0
        %2238 = vmatpush1.msra.mxu0 0.0
        %2239 = vmatprep.subr.mxu0 0.0
        %2240 = vmatpush1.msra.mxu0 0.0
        %2241 = vmatprep.subr.mxu0 0.0
        %2242 = vmatpush1.msra.mxu0 0.0
        %2243 = vmatprep.subr.mxu0 0.0
        %v2244 = vand.u32 %v2008, 4294901760
        %v2245 = vsub.f32 %v2008, %v2244
        %2246 = vmatpush1.msra.mxu0 %v2245
        %2247 = vmatprep.subr.mxu0 0.0
        %v2248 = vand.u32 %v2006, 4294901760
        %v2249 = vsub.f32 %v2006, %v2248
        %2250 = vmatpush1.msra.mxu0 %v2249
        %2251 = vmatprep.subr.mxu0 0.0
        %2252 = vmatpush2.msra.mxu0 0.0
        %2253 = vmatprep.subr.mxu0 0.0
        %2254 = vmatpush2.msra.mxu0 0.0
        %2255 = vmatprep.subr.mxu0 0.0
        %2256 = vmatpush2.msra.mxu0 0.0
        %2257 = vmatprep.subr.mxu0 0.0
        %2258 = vmatpush2.msra.mxu0 0.0
        %2259 = vmatprep.subr.mxu0 0.0
        %2260 = vmatpush2.msra.mxu0 0.0
        %2261 = vmatprep.subr.mxu0 0.0
        %2262 = vmatpush2.msra.mxu0 0.0
        %2263 = vmatprep.subr.mxu0 0.0
        %2264 = vmatpush2.msra.mxu0 0.0
        %2265 = vmatprep.subr.mxu0 0.0
        %2266 = vmatpush2.msra.mxu0 0.0
        %2267 = vmatprep.subr.mxu0 0.0
        %2268 = vmatpush2.msra.mxu0 0.0
        %2269 = vmatprep.subr.mxu0 0.0
        %2270 = vmatpush2.msra.mxu0 0.0
        %2271 = vmatprep.subr.mxu0 0.0
        %2272 = vmatpush2.msra.mxu0 0.0
        %2273 = vmatprep.subr.mxu0 0.0
        %2274 = vmatpush2.msra.mxu0 0.0
        %2275 = vmatprep.subr.mxu0 0.0
        %2276 = vmatpush2.msra.mxu0 0.0
        %2277 = vmatprep.subr.mxu0 0.0
        %2278 = vmatpush2.msra.mxu0 0.0
        %2279 = vmatprep.subr.mxu0 0.0
        %2280 = vmatpush2.msra.mxu0 0.0
        %2281 = vmatprep.subr.mxu0 0.0
        %2282 = vmatpush2.msra.mxu0 0.0
        %2283 = vmatprep.mubr.f32.mxu0 0.0
        %v2284 = vand.u32 %v812, 4294901760
        %v2285 = vsub.f32 %v812, %v2284
        %2286 = vmatmul.mubr.f32.gmra.mxu0 %v2285
        %v2287 = vpop.f32.mrf.mxu0
        %v2288 = vadd.f32 %v2194, %v2287
        %v2289 = vpop.f32.mrf.mxu0
        %2290 = vmatprep.mubr.f32.mxu0 0.0
        %v2291 = vand.u32 %v815, 4294901760
        %v2292 = vsub.f32 %v815, %v2291
        %2293 = vmatmul.mubr.f32.gmra.mxu0 %v2292
        %v2294 = vpop.f32.mrf.mxu0
        %v2295 = vadd.f32 %v2200, %v2294
        %v2296 = vpop.f32.mrf.mxu0
        %2297 = vmatprep.mubr.f32.mxu0 0.0
        %v2298 = vand.u32 %v818, 4294901760
        %v2299 = vsub.f32 %v818, %v2298
        %2300 = vmatmul.mubr.f32.gmra.mxu0 %v2299
        %v2301 = vpop.f32.mrf.mxu0
        %v2302 = vadd.f32 %v2206, %v2301
        %v2303 = vpop.f32.mrf.mxu0
        %2304 = vmatprep.mubr.f32.mxu0 0.0
        %v2305 = vand.u32 %v821, 4294901760
        %v2306 = vsub.f32 %v821, %v2305
        %2307 = vmatmul.mubr.f32.gmra.mxu0 %v2306
        %v2308 = vpop.f32.mrf.mxu0
        %v2309 = vadd.f32 %v2212, %v2308
        %v2310 = vpop.f32.mrf.mxu0
        %2311 = vdwg.mxu0
        %2312 = vmatprep.subr.mxu0 0.0
        %2313 = vmatpush1.msra.mxu0 0.0
        %2314 = vmatprep.subr.mxu0 0.0
        %2315 = vmatpush1.msra.mxu0 0.0
        %2316 = vmatprep.subr.mxu0 0.0
        %2317 = vmatpush1.msra.mxu0 0.0
        %2318 = vmatprep.subr.mxu0 0.0
        %2319 = vmatpush1.msra.mxu0 0.0
        %2320 = vmatprep.subr.mxu0 0.0
        %2321 = vmatpush1.msra.mxu0 0.0
        %2322 = vmatprep.subr.mxu0 0.0
        %2323 = vmatpush1.msra.mxu0 0.0
        %2324 = vmatprep.subr.mxu0 0.0
        %2325 = vmatpush1.msra.mxu0 0.0
        %2326 = vmatprep.subr.mxu0 0.0
        %2327 = vmatpush1.msra.mxu0 0.0
        %2328 = vmatprep.subr.mxu0 0.0
        %2329 = vmatpush1.msra.mxu0 0.0
        %2330 = vmatprep.subr.mxu0 0.0
        %2331 = vmatpush1.msra.mxu0 0.0
        %2332 = vmatprep.subr.mxu0 0.0
        %2333 = vmatpush1.msra.mxu0 0.0
        %2334 = vmatprep.subr.mxu0 0.0
        %2335 = vmatpush1.msra.mxu0 0.0
        %2336 = vmatprep.subr.mxu0 0.0
        %2337 = vmatpush1.msra.mxu0 0.0
        %2338 = vmatprep.subr.mxu0 0.0
        %2339 = vmatpush1.msra.mxu0 0.0
        %2340 = vmatprep.subr.mxu0 0.0
        %v2341 = vand.u32 %v2008, 4294901760
        %2342 = vmatpush1.msra.mxu0 %v2341
        %2343 = vmatprep.subr.mxu0 0.0
        %v2344 = vand.u32 %v2006, 4294901760
        %2345 = vmatpush1.msra.mxu0 %v2344
        %2346 = vmatprep.subr.mxu0 0.0
        %2347 = vmatpush2.msra.mxu0 0.0
        %2348 = vmatprep.subr.mxu0 0.0
        %2349 = vmatpush2.msra.mxu0 0.0
        %2350 = vmatprep.subr.mxu0 0.0
        %2351 = vmatpush2.msra.mxu0 0.0
        %2352 = vmatprep.subr.mxu0 0.0
        %2353 = vmatpush2.msra.mxu0 0.0
        %2354 = vmatprep.subr.mxu0 0.0
        %2355 = vmatpush2.msra.mxu0 0.0
        %2356 = vmatprep.subr.mxu0 0.0
        %2357 = vmatpush2.msra.mxu0 0.0
        %2358 = vmatprep.subr.mxu0 0.0
        %2359 = vmatpush2.msra.mxu0 0.0
        %2360 = vmatprep.subr.mxu0 0.0
        %2361 = vmatpush2.msra.mxu0 0.0
        %2362 = vmatprep.subr.mxu0 0.0
        %2363 = vmatpush2.msra.mxu0 0.0
        %2364 = vmatprep.subr.mxu0 0.0
        %2365 = vmatpush2.msra.mxu0 0.0
        %2366 = vmatprep.subr.mxu0 0.0
        %2367 = vmatpush2.msra.mxu0 0.0
        %2368 = vmatprep.subr.mxu0 0.0
        %2369 = vmatpush2.msra.mxu0 0.0
        %2370 = vmatprep.subr.mxu0 0.0
        %2371 = vmatpush2.msra.mxu0 0.0
        %2372 = vmatprep.subr.mxu0 0.0
        %2373 = vmatpush2.msra.mxu0 0.0
        %2374 = vmatprep.subr.mxu0 0.0
        %2375 = vmatpush2.msra.mxu0 0.0
        %2376 = vmatprep.subr.mxu0 0.0
        %2377 = vmatpush2.msra.mxu0 0.0
        %2378 = vmatprep.mubr.f32.mxu0 0.0
        %v2379 = vand.u32 %v812, 4294901760
        %v2380 = vsub.f32 %v812, %v2379
        %v2381 = vand.u32 %v2380, 4294901760
        %2382 = vmatmul.mubr.f32.gmra.mxu0 %v2381
        %v2383 = vpop.f32.mrf.mxu0
        %v2384 = vadd.f32 %v2288, %v2383
        %v2385 = vpop.f32.mrf.mxu0
        %2386 = vmatprep.mubr.f32.mxu0 0.0
        %v2387 = vand.u32 %v815, 4294901760
        %v2388 = vsub.f32 %v815, %v2387
        %v2389 = vand.u32 %v2388, 4294901760
        %2390 = vmatmul.mubr.f32.gmra.mxu0 %v2389
        %v2391 = vpop.f32.mrf.mxu0
        %v2392 = vadd.f32 %v2295, %v2391
        %v2393 = vpop.f32.mrf.mxu0
        %2394 = vmatprep.mubr.f32.mxu0 0.0
        %v2395 = vand.u32 %v818, 4294901760
        %v2396 = vsub.f32 %v818, %v2395
        %v2397 = vand.u32 %v2396, 4294901760
        %2398 = vmatmul.mubr.f32.gmra.mxu0 %v2397
        %v2399 = vpop.f32.mrf.mxu0
        %v2400 = vadd.f32 %v2302, %v2399
        %v2401 = vpop.f32.mrf.mxu0
        %2402 = vmatprep.mubr.f32.mxu0 0.0
        %v2403 = vand.u32 %v821, 4294901760
        %v2404 = vsub.f32 %v821, %v2403
        %v2405 = vand.u32 %v2404, 4294901760
        %2406 = vmatmul.mubr.f32.gmra.mxu0 %v2405
        %v2407 = vpop.f32.mrf.mxu0
        %v2408 = vadd.f32 %v2309, %v2407
        %v2409 = vpop.f32.mrf.mxu0
        %2410 = vdwg.mxu0
        %2411 = vmatprep.subr.mxu0 0.0
        %2412 = vmatpush1.msra.mxu0 0.0
        %2413 = vmatprep.subr.mxu0 0.0
        %2414 = vmatpush1.msra.mxu0 0.0
        %2415 = vmatprep.subr.mxu0 0.0
        %2416 = vmatpush1.msra.mxu0 0.0
        %2417 = vmatprep.subr.mxu0 0.0
        %2418 = vmatpush1.msra.mxu0 0.0
        %2419 = vmatprep.subr.mxu0 0.0
        %2420 = vmatpush1.msra.mxu0 0.0
        %2421 = vmatprep.subr.mxu0 0.0
        %2422 = vmatpush1.msra.mxu0 0.0
        %2423 = vmatprep.subr.mxu0 0.0
        %2424 = vmatpush1.msra.mxu0 0.0
        %2425 = vmatprep.subr.mxu0 0.0
        %2426 = vmatpush1.msra.mxu0 0.0
        %2427 = vmatprep.subr.mxu0 0.0
        %2428 = vmatpush1.msra.mxu0 0.0
        %2429 = vmatprep.subr.mxu0 0.0
        %2430 = vmatpush1.msra.mxu0 0.0
        %2431 = vmatprep.subr.mxu0 0.0
        %2432 = vmatpush1.msra.mxu0 0.0
        %2433 = vmatprep.subr.mxu0 0.0
        %2434 = vmatpush1.msra.mxu0 0.0
        %2435 = vmatprep.subr.mxu0 0.0
        %2436 = vmatpush1.msra.mxu0 0.0
        %2437 = vmatprep.subr.mxu0 0.0
        %2438 = vmatpush1.msra.mxu0 0.0
        %2439 = vmatprep.subr.mxu0 0.0
        %v2440 = vand.u32 %v2008, 4294901760
        %v2441 = vsub.f32 %v2008, %v2440
        %v2442 = vand.u32 %v2441, 4294901760
        %2443 = vmatpush1.msra.mxu0 %v2442
        %2444 = vmatprep.subr.mxu0 0.0
        %v2445 = vand.u32 %v2006, 4294901760
        %v2446 = vsub.f32 %v2006, %v2445
        %v2447 = vand.u32 %v2446, 4294901760
        %2448 = vmatpush1.msra.mxu0 %v2447
        %2449 = vmatprep.subr.mxu0 0.0
        %2450 = vmatpush2.msra.mxu0 0.0
        %2451 = vmatprep.subr.mxu0 0.0
        %2452 = vmatpush2.msra.mxu0 0.0
        %2453 = vmatprep.subr.mxu0 0.0
        %2454 = vmatpush2.msra.mxu0 0.0
        %2455 = vmatprep.subr.mxu0 0.0
        %2456 = vmatpush2.msra.mxu0 0.0
        %2457 = vmatprep.subr.mxu0 0.0
        %2458 = vmatpush2.msra.mxu0 0.0
        %2459 = vmatprep.subr.mxu0 0.0
        %2460 = vmatpush2.msra.mxu0 0.0
        %2461 = vmatprep.subr.mxu0 0.0
        %2462 = vmatpush2.msra.mxu0 0.0
        %2463 = vmatprep.subr.mxu0 0.0
        %2464 = vmatpush2.msra.mxu0 0.0
        %2465 = vmatprep.subr.mxu0 0.0
        %2466 = vmatpush2.msra.mxu0 0.0
        %2467 = vmatprep.subr.mxu0 0.0
        %2468 = vmatpush2.msra.mxu0 0.0
        %2469 = vmatprep.subr.mxu0 0.0
        %2470 = vmatpush2.msra.mxu0 0.0
        %2471 = vmatprep.subr.mxu0 0.0
        %2472 = vmatpush2.msra.mxu0 0.0
        %2473 = vmatprep.subr.mxu0 0.0
        %2474 = vmatpush2.msra.mxu0 0.0
        %2475 = vmatprep.subr.mxu0 0.0
        %2476 = vmatpush2.msra.mxu0 0.0
        %2477 = vmatprep.subr.mxu0 0.0
        %2478 = vmatpush2.msra.mxu0 0.0
        %2479 = vmatprep.subr.mxu0 0.0
        %2480 = vmatpush2.msra.mxu0 0.0
        %2481 = vmatprep.mubr.f32.mxu0 0.0
        %v2482 = vand.u32 %v812, 4294901760
        %2483 = vmatmul.mubr.f32.gmra.mxu0 %v2482
        %v2484 = vpop.f32.mrf.mxu0
        %v2485 = vadd.f32 %v2384, %v2484
        %v2486 = vpop.f32.mrf.mxu0
        %2487 = vmatprep.mubr.f32.mxu0 0.0
        %v2488 = vand.u32 %v815, 4294901760
        %2489 = vmatmul.mubr.f32.gmra.mxu0 %v2488
        %v2490 = vpop.f32.mrf.mxu0
        %v2491 = vadd.f32 %v2392, %v2490
        %v2492 = vpop.f32.mrf.mxu0
        %2493 = vmatprep.mubr.f32.mxu0 0.0
        %v2494 = vand.u32 %v818, 4294901760
        %2495 = vmatmul.mubr.f32.gmra.mxu0 %v2494
        %v2496 = vpop.f32.mrf.mxu0
        %v2497 = vadd.f32 %v2400, %v2496
        %v2498 = vpop.f32.mrf.mxu0
        %2499 = vmatprep.mubr.f32.mxu0 0.0
        %v2500 = vand.u32 %v821, 4294901760
        %2501 = vmatmul.mubr.f32.gmra.mxu0 %v2500
        %v2502 = vpop.f32.mrf.mxu0
        %v2503 = vadd.f32 %v2408, %v2502
        %v2504 = vpop.f32.mrf.mxu0
        %2505 = vdwg.mxu0
        %2506 = vmatprep.subr.mxu0 0.0
        %2507 = vmatpush1.msra.mxu0 0.0
        %2508 = vmatprep.subr.mxu0 0.0
        %2509 = vmatpush1.msra.mxu0 0.0
        %2510 = vmatprep.subr.mxu0 0.0
        %2511 = vmatpush1.msra.mxu0 0.0
        %2512 = vmatprep.subr.mxu0 0.0
        %2513 = vmatpush1.msra.mxu0 0.0
        %2514 = vmatprep.subr.mxu0 0.0
        %2515 = vmatpush1.msra.mxu0 0.0
        %2516 = vmatprep.subr.mxu0 0.0
        %2517 = vmatpush1.msra.mxu0 0.0
        %2518 = vmatprep.subr.mxu0 0.0
        %2519 = vmatpush1.msra.mxu0 0.0
        %2520 = vmatprep.subr.mxu0 0.0
        %2521 = vmatpush1.msra.mxu0 0.0
        %2522 = vmatprep.subr.mxu0 0.0
        %2523 = vmatpush1.msra.mxu0 0.0
        %2524 = vmatprep.subr.mxu0 0.0
        %2525 = vmatpush1.msra.mxu0 0.0
        %2526 = vmatprep.subr.mxu0 0.0
        %2527 = vmatpush1.msra.mxu0 0.0
        %2528 = vmatprep.subr.mxu0 0.0
        %2529 = vmatpush1.msra.mxu0 0.0
        %2530 = vmatprep.subr.mxu0 0.0
        %2531 = vmatpush1.msra.mxu0 0.0
        %2532 = vmatprep.subr.mxu0 0.0
        %2533 = vmatpush1.msra.mxu0 0.0
        %2534 = vmatprep.subr.mxu0 0.0
        %v2535 = vand.u32 %v2008, 4294901760
        %2536 = vmatpush1.msra.mxu0 %v2535
        %2537 = vmatprep.subr.mxu0 0.0
        %v2538 = vand.u32 %v2006, 4294901760
        %2539 = vmatpush1.msra.mxu0 %v2538
        %2540 = vmatprep.subr.mxu0 0.0
        %2541 = vmatpush2.msra.mxu0 0.0
        %2542 = vmatprep.subr.mxu0 0.0
        %2543 = vmatpush2.msra.mxu0 0.0
        %2544 = vmatprep.subr.mxu0 0.0
        %2545 = vmatpush2.msra.mxu0 0.0
        %2546 = vmatprep.subr.mxu0 0.0
        %2547 = vmatpush2.msra.mxu0 0.0
        %2548 = vmatprep.subr.mxu0 0.0
        %2549 = vmatpush2.msra.mxu0 0.0
        %2550 = vmatprep.subr.mxu0 0.0
        %2551 = vmatpush2.msra.mxu0 0.0
        %2552 = vmatprep.subr.mxu0 0.0
        %2553 = vmatpush2.msra.mxu0 0.0
        %2554 = vmatprep.subr.mxu0 0.0
        %2555 = vmatpush2.msra.mxu0 0.0
        %2556 = vmatprep.subr.mxu0 0.0
        %2557 = vmatpush2.msra.mxu0 0.0
        %2558 = vmatprep.subr.mxu0 0.0
        %2559 = vmatpush2.msra.mxu0 0.0
        %2560 = vmatprep.subr.mxu0 0.0
        %2561 = vmatpush2.msra.mxu0 0.0
        %2562 = vmatprep.subr.mxu0 0.0
        %2563 = vmatpush2.msra.mxu0 0.0
        %2564 = vmatprep.subr.mxu0 0.0
        %2565 = vmatpush2.msra.mxu0 0.0
        %2566 = vmatprep.subr.mxu0 0.0
        %2567 = vmatpush2.msra.mxu0 0.0
        %2568 = vmatprep.subr.mxu0 0.0
        %2569 = vmatpush2.msra.mxu0 0.0
        %2570 = vmatprep.subr.mxu0 0.0
        %2571 = vmatpush2.msra.mxu0 0.0
        %2572 = vmatprep.mubr.f32.mxu0 0.0
        %v2573 = vand.u32 %v812, 4294901760
        %2574 = vmatmul.mubr.f32.gmra.mxu0 %v2573
        %v2575 = vpop.f32.mrf.mxu0
        %v2576 = vadd.f32 %v2485, %v2575
        %v2577 = vpop.f32.mrf.mxu0
        %2578 = vmatprep.mubr.f32.mxu0 0.0
        %v2579 = vand.u32 %v815, 4294901760
        %2580 = vmatmul.mubr.f32.gmra.mxu0 %v2579
        %v2581 = vpop.f32.mrf.mxu0
        %v2582 = vadd.f32 %v2491, %v2581
        %v2583 = vpop.f32.mrf.mxu0
        %2584 = vmatprep.mubr.f32.mxu0 0.0
        %v2585 = vand.u32 %v818, 4294901760
        %2586 = vmatmul.mubr.f32.gmra.mxu0 %v2585
        %v2587 = vpop.f32.mrf.mxu0
        %v2588 = vadd.f32 %v2497, %v2587
        %v2589 = vpop.f32.mrf.mxu0
        %2590 = vmatprep.mubr.f32.mxu0 0.0
        %v2591 = vand.u32 %v821, 4294901760
        %2592 = vmatmul.mubr.f32.gmra.mxu0 %v2591
        %v2593 = vpop.f32.mrf.mxu0
        %v2594 = vadd.f32 %v2503, %v2593
        %v2595 = vpop.f32.mrf.mxu0
        %2596 = vdwg.mxu0
        %v2597 = vld [vmem:[%s1] sm:$0xff]
        %v2598 = vld [vmem:[%s1 + $0x8] sm:$0xff]
        %v2599 = vld [vmem:[%s1 + $0x10] sm:$0xff]
        %v2600 = vld [vmem:[%s1 + $0x18] sm:$0xff]
        %v2601 = vld [vmem:[%s2] sm:$0xff]
        %v2602 = vld [vmem:[%s2 + $0x8] sm:$0xff]
        %v2603 = vld [vmem:[%s2 + $0x10] sm:$0xff]
        %v2604 = vld [vmem:[%s2 + $0x18] sm:$0xff]
        %v2605 = vmul.f32 %v2597, %v2576
        %v2606 = vmul.f32 %v2598, %v2582
        %v2607 = vmul.f32 %v2599, %v2588
        %v2608 = vmul.f32 %v2600, %v2594
        %2610 = vset.pattern.permute.xlu0 0
        %2611 = vperm.xlu0 %2610, %v2605
        %v2612 = vpop.permute.xlu0 %2611
        %2615 = vset.pattern.permute.xlu0 0
        %2616 = vperm.xlu0 %2615, %v2606
        %v2617 = vpop.permute.xlu0 %2616
        %2620 = vset.pattern.permute.xlu0 0
        %2621 = vperm.xlu0 %2620, %v2607
        %v2622 = vpop.permute.xlu0 %2621
        %2625 = vset.pattern.permute.xlu0 0
        %2626 = vperm.xlu0 %2625, %v2608
        %v2627 = vpop.permute.xlu0 %2626
        %v2629 = vmul.f32 %v1431, %v2612
        %v2630 = vmul.f32 %v1432, %v2612
        %v2631 = vmul.f32 %v1433, %v2617
        %v2632 = vmul.f32 %v1434, %v2617
        %v2633 = vmul.f32 %v1435, %v2622
        %v2634 = vmul.f32 %v1436, %v2622
        %v2635 = vmul.f32 %v1437, %v2627
        %v2636 = vmul.f32 %v1438, %v2627
        %2638 = vset.pattern.permute.xlu0 0
        %2639 = vperm.xlu0 %2638, %v2601
        %v2640 = vpop.permute.xlu0 %2639
        %2643 = vset.pattern.permute.xlu0 0
        %2644 = vperm.xlu0 %2643, %v2602
        %v2645 = vpop.permute.xlu0 %2644
        %2648 = vset.pattern.permute.xlu0 0
        %2649 = vperm.xlu0 %2648, %v2603
        %v2650 = vpop.permute.xlu0 %2649
        %2653 = vset.pattern.permute.xlu0 0
        %2654 = vperm.xlu0 %2653, %v2604
        %v2655 = vpop.permute.xlu0 %2654
        %v2657 = vadd.f32 %v2629, %v2640
        %v2658 = vadd.f32 %v2630, %v2640
        %v2659 = vadd.f32 %v2631, %v2645
        %v2660 = vadd.f32 %v2632, %v2645
        %v2661 = vadd.f32 %v2633, %v2650
        %v2662 = vadd.f32 %v2634, %v2650
        %v2663 = vadd.f32 %v2635, %v2655
        %v2664 = vadd.f32 %v2636, %v2655
        %2665 = vst [vmem:[%s207] sm:$0xff] %v2657
        %2666 = vst [vmem:[%s207 + $0x8] sm:$0xff] %v2658
        %2667 = vst [vmem:[%s207 + $0x10] sm:$0xff] %v2659
        %2668 = vst [vmem:[%s207 + $0x18] sm:$0xff] %v2660
        %2669 = vst [vmem:[%s207 + $0x20] sm:$0xff] %v2661
        %2670 = vst [vmem:[%s207 + $0x28] sm:$0xff] %v2662
        %2671 = vst [vmem:[%s207 + $0x30] sm:$0xff] %v2663
        %2672 = vst [vmem:[%s207 + $0x38] sm:$0xff] %v2664
        %s2673 = sand.u32 %s112, 1
        %s2674 = scalar_lea.sflag [#allocation4], %s2673
        %s2675 = sand.u32 %s112, 1
        %s2676 = smul.addr %s2675, 64
        %s2677 = scalar_lea.vmem [#allocation5], %s2676
        // Predicated region
        $region37: #{tpu_custom_call.1} parent=31 // pred_check
          %p2678 = pneg %p122
        $region38: #{tpu_custom_call.1} parent=31 // pred_check_branch
          %2680 = sbr.rel (%p2678) target = $region40
        $region39: #{tpu_custom_call.1} parent=31 // pred_region
          %s2681 = smul.u32 4, %s25
          %s2683 = ssub.s32 1024, 1024
          %2684 = vsyncadd %s2674, %s2683
          %s2685 = smul.addr %s2681, 2
          %s2686 = smul.addr %s24, 8
          %s2687 = sadd.s32 %s2685, %s2686
          %s2688 = smul.addr %s2687, 128
          %s2689 = scalar_lea.hbm %s3, %s2688
          %s2690 = sshll.u32 %s2677, 4
          %s2691 = int_to_ptr.vmem [resolvable:$true] %s2690
          %2696 = dma.vmem_to_hbm [thread:$0]  %s2691, 1024, %s2689, %s2674, 256, 256, 16
        $region40: #{tpu_custom_call.1} parent=31 // pred_fallthru
          _
      $region32: #{tpu_custom_call.1} parent=5 // pred_fallthru
        _
      %p2697 = scmp.le.s32.totalorder 2, %s15
      // Predicated region
      $region41: #{tpu_custom_call.1} parent=5 // pred_check
        %p2698 = pneg %p2697
      $region42: #{tpu_custom_call.1} parent=5 // pred_check_branch
        %2700 = sbr.rel (%p2698) target = $region44
      $region43: #{tpu_custom_call.1} parent=5 // pred_region
        %s2701 = ssub.s32 %s15, 2
        // Predicated region
        $region45: #{tpu_custom_call.1} parent=43 // pred_check
          %p2702 = pneg %p128
        $region46: #{tpu_custom_call.1} parent=43 // pred_check_branch
          %2704 = sbr.rel (%p2702) target = $region48
        $region47: #{tpu_custom_call.1} parent=43 // pred_region
          %s2705 = sand.u32 %s113, 1
          %s2706 = scalar_lea.sflag [#allocation4], %s2705
          %s2707 = sand.u32 %s113, 1
          %s2708 = smul.addr %s2707, 64
          %s2709 = scalar_lea.vmem [#allocation5], %s2708
          %2710 = dma.done %s2706, 1024
        $region48: #{tpu_custom_call.1} parent=43 // pred_fallthru
          _
      $region44: #{tpu_custom_call.1} parent=5 // pred_fallthru
        _
    $region6: #{tpu_custom_call.1} parent=1 // loop_footer
      %s19 = sadd.s32 1, %s15
    $region7: #{tpu_custom_call.1} parent=1 // loop_footer_branch
      %14 = sbr.rel target = $region3
    $region8: #{tpu_custom_call.1} parent=1 // loop_exit
      _
    %2711 = vsyncpa [#allocation3], 1
    %s2712 = scalar_lea.sflag [#allocation3], 1
    %2713 = vsyncpa %s2712, 1
    %2714 = vsyncpa [#allocation4], 1
    %s2715 = scalar_lea.sflag [#allocation4], 1
    %2716 = vsyncpa %s2715, 1

</llo_original>
